<compile_context>
chip_gen: v5e
topology: v5e:2x2
jax: 0.10.0
libtpu: 0.0.40
codegen_flags: <defaults>
</compile_context>

<pallas_src>
import functools

import jax
import jax.numpy as jnp
from jax.experimental import pallas as pl
from jax.experimental.pallas import tpu as pltpu

NOISE_SIZE = 10
H1 = 128
H2 = 400
OUT = 784
NEG_SLOPE = 0.2

# Lane-padded (multiple-of-128) hidden/output widths for unmasked MXU / vst.
H2_PAD = 512
OUT_PAD = 896


def _round_up(x, m):
    return ((x + m - 1) // m) * m


def _leaky_relu(x, neg_slope):
    return jnp.where(x > 0, x, neg_slope * x)


def g_mlp_kernel(x_ref, w1_ref, b1_ref, w2_ref, b2_ref, w3_ref, b3_ref, out_ref):
    # x: bf16 [TB, 10]; weights bf16; biases f32; out f32 [TB, OUT_PAD]
    x = x_ref[...]
    h1 = jnp.dot(x, w1_ref[...], preferred_element_type=jnp.float32)      # [TB, 128]
    h1 = _leaky_relu(h1 + b1_ref[...], NEG_SLOPE).astype(jnp.bfloat16)
    h2 = jnp.dot(h1, w2_ref[...], preferred_element_type=jnp.float32)     # [TB, 512]
    h2 = _leaky_relu(h2 + b2_ref[...], NEG_SLOPE).astype(jnp.bfloat16)
    pred = jnp.dot(h2, w3_ref[...], preferred_element_type=jnp.float32)   # [TB, 896]
    out_ref[...] = (pred + b3_ref[...]).astype(out_ref.dtype)


def _pad_and_cast_params(params):
    """Zero-pad H2->512 and OUT->896; bf16 MXU weights, f32 biases."""
    w1, b1, w2, b2, w3, b3 = params
    w2p = jnp.pad(w2, ((0, 0), (0, H2_PAD - H2)))
    b2p = jnp.pad(b2, ((0, 0), (0, H2_PAD - H2)))
    w3p = jnp.pad(w3, ((0, H2_PAD - H2), (0, OUT_PAD - OUT)))
    b3p = jnp.pad(b3, ((0, 0), (0, OUT_PAD - OUT)))
    return (w1.astype(jnp.bfloat16), b1.astype(jnp.float32),
            w2p.astype(jnp.bfloat16), b2p.astype(jnp.float32),
            w3p.astype(jnp.bfloat16), b3p.astype(jnp.float32))


@functools.partial(jax.jit, static_argnames=("block_b",))
def g_forward(x, params, *, block_b=256):
    B = x.shape[0]
    TB = min(block_b, _round_up(B, 8))      # sublane-aligned batch tile
    B_pad = _round_up(B, TB)
    grid_b = B_pad // TB

    w1, b1, w2, b2, w3, b3 = _pad_and_cast_params(params)
    x_p = x.astype(jnp.bfloat16)
    if B_pad != B:
        x_p = jnp.pad(x_p, ((0, B_pad - B), (0, 0)))

    def const_spec(shape):
        return pl.BlockSpec(shape, lambda i: (0,) * len(shape))

    flops = 2 * B_pad * (NOISE_SIZE * H1 + H1 * H2_PAD + H2_PAD * OUT_PAD)
    bytes_accessed = (
        x_p.size * 2
        + (w1.size + w2.size + w3.size) * 2
        + (b1.size + b2.size + b3.size) * 4
        + B_pad * OUT_PAD * 4
    )

    out = pl.pallas_call(
        g_mlp_kernel,
        out_shape=jax.ShapeDtypeStruct((B_pad, OUT_PAD), jnp.float32),
        grid=(grid_b,),
        in_specs=[
            pl.BlockSpec((TB, NOISE_SIZE), lambda i: (i, 0)),   # x: batch-tiled
            const_spec(w1.shape), const_spec(b1.shape),         # weights: VMEM-resident
            const_spec(w2.shape), const_spec(b2.shape),
            const_spec(w3.shape), const_spec(b3.shape),
        ],
        out_specs=pl.BlockSpec((TB, OUT_PAD), lambda i: (i, 0)),
        compiler_params=pltpu.CompilerParams(
            dimension_semantics=("parallel",)),
        cost_estimate=pl.CostEstimate(
            flops=flops, transcendentals=0, bytes_accessed=bytes_accessed),
    )(x_p, w1, b1, w2, b2, w3, b3)

    return out[:B, :OUT]


def init_params(key):
    # PyTorch-style init: U(-1/sqrt(fan_in), 1/sqrt(fan_in)); stored as [in, out]
    # so the kernel computes x @ W + b (== x @ W_torch.T + b).
    ks = jax.random.split(key, 6)

    def lin(kw, kb, fan_in, fan_out):
        bound = 1.0 / jnp.sqrt(fan_in)
        w = jax.random.uniform(kw, (fan_in, fan_out), jnp.float32, -bound, bound)
        b = jax.random.uniform(kb, (1, fan_out), jnp.float32, -bound, bound)
        return w, b

    w1, b1 = lin(ks[0], ks[1], NOISE_SIZE, H1)
    w2, b2 = lin(ks[2], ks[3], H1, H2)
    w3, b3 = lin(ks[4], ks[5], H2, OUT)
    return (w1, b1, w2, b2, w3, b3)


def g_reference(x, params):
    w1, b1, w2, b2, w3, b3 = params
    h1 = jax.nn.leaky_relu(x @ w1 + b1, NEG_SLOPE)
    h2 = jax.nn.leaky_relu(h1 @ w2 + b2, NEG_SLOPE)
    return h2 @ w3 + b3


if __name__ == "__main__":
    key = jax.random.PRNGKey(0)
    k_params, k_x = jax.random.split(key)
    params = init_params(k_params)

    B = 8
    x = jax.random.normal(k_x, (B, NOISE_SIZE), jnp.float32)

    out = jax.block_until_ready(g_forward(x, params))
    ref = g_reference(x, params)

    assert out.shape == (B, OUT), out.shape
    # bf16 MXU operands vs f32 reference -> looser tolerance than the pure-f32 version.
    err = float(jnp.max(jnp.abs(out - ref)))
    assert err < 5e-2, err
    print("KERNEL_OK")
</pallas_src>

<mosaic_0001>
module attributes {stable_mosaic.version = 11 : i64} {
  func.func @g_mlp_kernel(%arg0: i32, %arg1: memref<8x10xbf16, #tpu.memory_space<vmem>>, %arg2: memref<10x128xbf16, #tpu.memory_space<vmem>>, %arg3: memref<1x128xf32, #tpu.memory_space<vmem>>, %arg4: memref<128x512xbf16, #tpu.memory_space<vmem>>, %arg5: memref<1x512xf32, #tpu.memory_space<vmem>>, %arg6: memref<512x896xbf16, #tpu.memory_space<vmem>>, %arg7: memref<1x896xf32, #tpu.memory_space<vmem>>, %arg8: memref<8x896xf32, #tpu.memory_space<vmem>>) attributes {dimension_semantics = [#tpu.dimension_semantics<parallel>], iteration_bounds = array<i64: 1>, scalar_prefetch = 0 : i64, scratch_operands = 0 : i64, tpu.core_type = #tpu.core_type<tc>, window_params = [{transform_indices = @transform_0, window_bounds = array<i64: 8, 10>}, {pipeline_mode = #tpu.pipeline_mode<synchronous>, transform_indices = @transform_1, window_bounds = array<i64: 10, 128>}, {pipeline_mode = #tpu.pipeline_mode<synchronous>, transform_indices = @transform_2, window_bounds = array<i64: 1, 128>}, {pipeline_mode = #tpu.pipeline_mode<synchronous>, transform_indices = @transform_3, window_bounds = array<i64: 128, 512>}, {pipeline_mode = #tpu.pipeline_mode<synchronous>, transform_indices = @transform_4, window_bounds = array<i64: 1, 512>}, {pipeline_mode = #tpu.pipeline_mode<synchronous>, transform_indices = @transform_5, window_bounds = array<i64: 512, 896>}, {pipeline_mode = #tpu.pipeline_mode<synchronous>, transform_indices = @transform_6, window_bounds = array<i64: 1, 896>}, {transform_indices = @transform_7, window_bounds = array<i64: 8, 896>}]} {
    %c0 = arith.constant 0 : index
    %c0_0 = arith.constant 0 : index
    %0 = vector.load %arg1[%c0, %c0_0] : memref<8x10xbf16, #tpu.memory_space<vmem>>, vector<8x10xbf16>
    %c0_1 = arith.constant 0 : index
    %c0_2 = arith.constant 0 : index
    %1 = vector.load %arg2[%c0_1, %c0_2] : memref<10x128xbf16, #tpu.memory_space<vmem>>, vector<10x128xbf16>
    %cst = arith.constant dense<0.000000e+00> : vector<8x128xf32>
    %2 = tpu.matmul %0, %1, %cst {dimension_numbers = #tpu.dot_dimension_numbers<[1], [0], [0], [1], [0, 0, 1, 1], [], []>} : vector<8x10xbf16>, vector<10x128xbf16>, vector<8x128xf32> -> vector<8x128xf32>
    %c0_3 = arith.constant 0 : index
    %c0_4 = arith.constant 0 : index
    %3 = vector.load %arg3[%c0_3, %c0_4] : memref<1x128xf32, #tpu.memory_space<vmem>>, vector<1x128xf32>
    %4 = vector.broadcast %3 : vector<1x128xf32> to vector<8x128xf32>
    %5 = arith.addf %2, %4 : vector<8x128xf32>
    %cst_5 = arith.constant 0.000000e+00 : f32
    %6 = vector.broadcast %cst_5 : f32 to vector<8x128xf32>
    %7 = arith.cmpf ogt, %5, %6 : vector<8x128xf32>
    %cst_6 = arith.constant 2.000000e-01 : f32
    %8 = vector.broadcast %cst_6 : f32 to vector<8x128xf32>
    %9 = arith.mulf %8, %5 : vector<8x128xf32>
    %10 = arith.select %7, %5, %9 : vector<8x128xi1>, vector<8x128xf32>
    %11 = arith.truncf %10 : vector<8x128xf32> to vector<8x128xbf16>
    %c0_7 = arith.constant 0 : index
    %c0_8 = arith.constant 0 : index
    %12 = vector.load %arg4[%c0_7, %c0_8] : memref<128x512xbf16, #tpu.memory_space<vmem>>, vector<128x512xbf16>
    %cst_9 = arith.constant dense<0.000000e+00> : vector<8x512xf32>
    %13 = tpu.matmul %11, %12, %cst_9 {dimension_numbers = #tpu.dot_dimension_numbers<[1], [0], [0], [1], [0, 0, 1, 1], [], []>} : vector<8x128xbf16>, vector<128x512xbf16>, vector<8x512xf32> -> vector<8x512xf32>
    %c0_10 = arith.constant 0 : index
    %c0_11 = arith.constant 0 : index
    %14 = vector.load %arg5[%c0_10, %c0_11] : memref<1x512xf32, #tpu.memory_space<vmem>>, vector<1x512xf32>
    %15 = vector.broadcast %14 : vector<1x512xf32> to vector<8x512xf32>
    %16 = arith.addf %13, %15 : vector<8x512xf32>
    %cst_12 = arith.constant 0.000000e+00 : f32
    %17 = vector.broadcast %cst_12 : f32 to vector<8x512xf32>
    %18 = arith.cmpf ogt, %16, %17 : vector<8x512xf32>
    %cst_13 = arith.constant 2.000000e-01 : f32
    %19 = vector.broadcast %cst_13 : f32 to vector<8x512xf32>
    %20 = arith.mulf %19, %16 : vector<8x512xf32>
    %21 = arith.select %18, %16, %20 : vector<8x512xi1>, vector<8x512xf32>
    %22 = arith.truncf %21 : vector<8x512xf32> to vector<8x512xbf16>
    %c0_14 = arith.constant 0 : index
    %c0_15 = arith.constant 0 : index
    %23 = vector.load %arg6[%c0_14, %c0_15] : memref<512x896xbf16, #tpu.memory_space<vmem>>, vector<512x896xbf16>
    %cst_16 = arith.constant dense<0.000000e+00> : vector<8x896xf32>
    %24 = tpu.matmul %22, %23, %cst_16 {dimension_numbers = #tpu.dot_dimension_numbers<[1], [0], [0], [1], [0, 0, 1, 1], [], []>} : vector<8x512xbf16>, vector<512x896xbf16>, vector<8x896xf32> -> vector<8x896xf32>
    %c0_17 = arith.constant 0 : index
    %c0_18 = arith.constant 0 : index
    %25 = vector.load %arg7[%c0_17, %c0_18] : memref<1x896xf32, #tpu.memory_space<vmem>>, vector<1x896xf32>
    %26 = vector.broadcast %25 : vector<1x896xf32> to vector<8x896xf32>
    %27 = arith.addf %24, %26 : vector<8x896xf32>
    %c0_19 = arith.constant 0 : index
    %c0_20 = arith.constant 0 : index
    %28 = vector.load %arg8[%c0_19, %c0_20] : memref<8x896xf32, #tpu.memory_space<vmem>>, vector<8x896xf32>
    tpu.vector_store %arg8[%c0_19, %c0_20], %27 {strides = array<i32>} : memref<8x896xf32, #tpu.memory_space<vmem>>, vector<8x896xf32>,
    return
  }
  func.func @transform_0(%arg0: i32) -> (i32, i32) {
    %c0_i32 = arith.constant 0 : i32
    %c0_i32_0 = arith.constant 0 : i32
    return %arg0, %c0_i32 : i32, i32
  }
  func.func @transform_1(%arg0: i32) -> (i32, i32) {
    %c0_i32 = arith.constant 0 : i32
    %c0_i32_0 = arith.constant 0 : i32
    %c0_i32_1 = arith.constant 0 : i32
    return %c0_i32, %c0_i32_0 : i32, i32
  }
  func.func @transform_2(%arg0: i32) -> (i32, i32) {
    %c0_i32 = arith.constant 0 : i32
    %c0_i32_0 = arith.constant 0 : i32
    %c0_i32_1 = arith.constant 0 : i32
    return %c0_i32, %c0_i32_0 : i32, i32
  }
  func.func @transform_3(%arg0: i32) -> (i32, i32) {
    %c0_i32 = arith.constant 0 : i32
    %c0_i32_0 = arith.constant 0 : i32
    %c0_i32_1 = arith.constant 0 : i32
    return %c0_i32, %c0_i32_0 : i32, i32
  }
  func.func @transform_4(%arg0: i32) -> (i32, i32) {
    %c0_i32 = arith.constant 0 : i32
    %c0_i32_0 = arith.constant 0 : i32
    %c0_i32_1 = arith.constant 0 : i32
    return %c0_i32, %c0_i32_0 : i32, i32
  }
  func.func @transform_5(%arg0: i32) -> (i32, i32) {
    %c0_i32 = arith.constant 0 : i32
    %c0_i32_0 = arith.constant 0 : i32
    %c0_i32_1 = arith.constant 0 : i32
    return %c0_i32, %c0_i32_0 : i32, i32
  }
  func.func @transform_6(%arg0: i32) -> (i32, i32) {
    %c0_i32 = arith.constant 0 : i32
    %c0_i32_0 = arith.constant 0 : i32
    %c0_i32_1 = arith.constant 0 : i32
    return %c0_i32, %c0_i32_0 : i32, i32
  }
  func.func @transform_7(%arg0: i32) -> (i32, i32) {
    %c0_i32 = arith.constant 0 : i32
    %c0_i32_0 = arith.constant 0 : i32
    return %arg0, %c0_i32 : i32, i32
  }
}

</mosaic_0001>

<llo_original>
// kernel: g_forward.1
$region0: #{g_forward.1}
  #allocation0 [shape = 'u32[]', space=smem, size = 0x4, offset = 0x4, fixed_abs, tag = 'smem constant byte address 0x4 - core index']
  #allocation1 [shape = 'u32[72,128]{1,0:T(1,128)}', space=vmem, size = 0x9000, scoped, tag = 'internal scratch']
  %s0 = inlined_call_operand.vmem [shape: bf16[8,10], index: 0, kind: input, shape index: {}]
  %s1 = inlined_call_operand.vmem [shape: bf16[10,128], index: 1, kind: input, shape index: {}]
  %s2 = inlined_call_operand.vmem [shape: f32[1,128], index: 2, kind: input, shape index: {}]
  %s3 = inlined_call_operand.vmem [shape: bf16[128,512], index: 3, kind: input, shape index: {}]
  %s4 = inlined_call_operand.vmem [shape: f32[1,512], index: 4, kind: input, shape index: {}]
  %s5 = inlined_call_operand.vmem [shape: bf16[512,896], index: 5, kind: input, shape index: {}]
  %s6 = inlined_call_operand.vmem [shape: f32[1,896], index: 6, kind: input, shape index: {}]
  %s7 = inlined_call_operand.hbm [shape: f32[8,896], index: 7, kind: output, shape index: {}]
  %s8 = sld [smem:[#allocation0]]
  $region38: #{g_forward.1} parent=0
    _
  %s10 = ssub.s32 1, %s8
  %s11 = scalar_select 0, %s10, %s8
  $region1: #{g_forward.1} parent=0
    #allocation2 [shape = 'u8[28672]{0}', space=vmem, size = 0x7000, scoped, tag = 'output window, operand 0, single buffered']
    #allocation3 [shape = 's32[1]{0}', space=sflag, size = 0x4, scoped, tag = 'scoped memory for g_forward.1']
    %12 = vsyncpa [#allocation3], 0
    // Predicated region
    $region2: #{g_forward.1} parent=1 // pred_check
      _
    $region3: #{g_forward.1} parent=1 // pred_check_branch
      %14 = sbr.rel (0) target = $region5
    $region4: #{g_forward.1} parent=1 // pred_region
      _
    $region5: #{g_forward.1} parent=1 // pred_fallthru
      _
    // Predicated region
    $region6: #{g_forward.1} parent=1 // pred_check
      _
    $region7: #{g_forward.1} parent=1 // pred_check_branch
      %16 = sbr.rel (0) target = $region9
    $region8: #{g_forward.1} parent=1 // pred_region
      _
    $region9: #{g_forward.1} parent=1 // pred_fallthru
      _
    // Predicated region
    $region10: #{g_forward.1} parent=1 // pred_check
      _
    $region11: #{g_forward.1} parent=1 // pred_check_branch
      %18 = sbr.rel (0) target = $region13
    $region12: #{g_forward.1} parent=1 // pred_region
      _
    $region13: #{g_forward.1} parent=1 // pred_fallthru
      _
    // Predicated region
    $region14: #{g_forward.1} parent=1 // pred_check
      _
    $region15: #{g_forward.1} parent=1 // pred_check_branch
      %20 = sbr.rel (0) target = $region17
    $region16: #{g_forward.1} parent=1 // pred_region
      _
    $region17: #{g_forward.1} parent=1 // pred_fallthru
      _
    // Predicated region
    $region18: #{g_forward.1} parent=1 // pred_check
      _
    $region19: #{g_forward.1} parent=1 // pred_check_branch
      %22 = sbr.rel (0) target = $region21
    $region20: #{g_forward.1} parent=1 // pred_region
      _
    $region21: #{g_forward.1} parent=1 // pred_fallthru
      _
    // Predicated region
    $region22: #{g_forward.1} parent=1 // pred_check
      _
    $region23: #{g_forward.1} parent=1 // pred_check_branch
      %24 = sbr.rel (0) target = $region25
    $region24: #{g_forward.1} parent=1 // pred_region
      _
    $region25: #{g_forward.1} parent=1 // pred_fallthru
      _
    // Predicated region
    $region26: #{g_forward.1} parent=1 // pred_check
      _
    $region27: #{g_forward.1} parent=1 // pred_check_branch
      %26 = sbr.rel (0) target = $region29
    $region28: #{g_forward.1} parent=1 // pred_region
      _
    $region29: #{g_forward.1} parent=1 // pred_fallthru
      _
    %v28 = vld [vmem:[%s0] sm:$0xf]
    %v29 = vld [vmem:[%s1] sm:$0xf]
    %v30 = vld [vmem:[%s1 + $0x4] sm:$0x1]
    %v31 = vld [vmem:[%s2] sm:$0x1]
    %v33 = vperm.slane %v31, 0
    %v37 = vunpack.c.l.b16 %v29
    %v38 = vunpack.c.l.b16 %v30
    %v39 = vpack.c.b16 %v38, %v37
    %vm40 = vcmask 80896
    %v42 = vsel %vm40, %v28, 0
    %vm44 = vcmask 1044480
    %v46 = vsel %vm44, %v39, 0
    %48 = vmatpush.bf16.msra.mxu0 0
    %49 = vmatpush.bf16.msra.mxu0 0
    %50 = vmatpush.bf16.msra.mxu0 0
    %51 = vmatpush.bf16.msra.mxu0 0
    %52 = vmatpush.bf16.msra.mxu0 0
    %53 = vmatpush.bf16.msra.mxu0 0
    %54 = vmatpush.bf16.msra.mxu0 0
    %55 = vmatpush.bf16.msra.mxu0 %v46
    %56 = vmatmul.bf16.gmra.mxu0 %v42
    %v57 = vpop.f32.mrf.mxu0
    %v58 = vadd.f32 %v33, %v57
    %v59 = vpop.f32.mrf.mxu0
    %60 = vdwg.mxu0
    %vm61 = vcmp.gt.f32.partialorder %v58, 0.0
    %v62 = vmul.f32 %v58, 0.2
    %v63 = vsel %vm61, %v58, %v62
    %v64 = vpack.c.bf16 %v63, %v63
    %v65 = vld [vmem:[%s3] sm:$0xff]
    %v66 = vld [vmem:[%s3 + $0x8] sm:$0xff]
    %v67 = vld [vmem:[%s3 + $0x10] sm:$0xff]
    %v68 = vld [vmem:[%s3 + $0x18] sm:$0xff]
    %v69 = vld [vmem:[%s3 + $0x20] sm:$0xff]
    %v70 = vld [vmem:[%s3 + $0x28] sm:$0xff]
    %v71 = vld [vmem:[%s3 + $0x30] sm:$0xff]
    %v72 = vld [vmem:[%s3 + $0x38] sm:$0xff]
    %v73 = vld [vmem:[%s3 + $0x40] sm:$0xff]
    %v74 = vld [vmem:[%s3 + $0x48] sm:$0xff]
    %v75 = vld [vmem:[%s3 + $0x50] sm:$0xff]
    %v76 = vld [vmem:[%s3 + $0x58] sm:$0xff]
    %v77 = vld [vmem:[%s3 + $0x60] sm:$0xff]
    %v78 = vld [vmem:[%s3 + $0x68] sm:$0xff]
    %v79 = vld [vmem:[%s3 + $0x70] sm:$0xff]
    %v80 = vld [vmem:[%s3 + $0x78] sm:$0xff]
    %v81 = vld [vmem:[%s3 + $0x80] sm:$0xff]
    %v82 = vld [vmem:[%s3 + $0x88] sm:$0xff]
    %v83 = vld [vmem:[%s3 + $0x90] sm:$0xff]
    %v84 = vld [vmem:[%s3 + $0x98] sm:$0xff]
    %v85 = vld [vmem:[%s3 + $0xa0] sm:$0xff]
    %v86 = vld [vmem:[%s3 + $0xa8] sm:$0xff]
    %v87 = vld [vmem:[%s3 + $0xb0] sm:$0xff]
    %v88 = vld [vmem:[%s3 + $0xb8] sm:$0xff]
    %v89 = vld [vmem:[%s3 + $0xc0] sm:$0xff]
    %v90 = vld [vmem:[%s3 + $0xc8] sm:$0xff]
    %v91 = vld [vmem:[%s3 + $0xd0] sm:$0xff]
    %v92 = vld [vmem:[%s3 + $0xd8] sm:$0xff]
    %v93 = vld [vmem:[%s3 + $0xe0] sm:$0xff]
    %v94 = vld [vmem:[%s3 + $0xe8] sm:$0xff]
    %v95 = vld [vmem:[%s3 + $0xf0] sm:$0xff]
    %v96 = vld [vmem:[%s3 + $0xf8] sm:$0xff]
    %v97 = vld [vmem:[%s4] sm:$0xf]
    %v99 = vperm.slane %v97, 0
    %v100 = vperm.slane %v97, 1
    %v101 = vperm.slane %v97, 2
    %v102 = vperm.slane %v97, 3
    %v139 = vunpack.c.l.b16 %v65
    %v140 = vunpack.c.h.b16 %v65
    %v141 = vunpack.c.l.b16 %v66
    %v142 = vunpack.c.h.b16 %v66
    %v143 = vunpack.c.l.b16 %v67
    %v144 = vunpack.c.h.b16 %v67
    %v145 = vunpack.c.l.b16 %v68
    %v146 = vunpack.c.h.b16 %v68
    %v147 = vunpack.c.l.b16 %v69
    %v148 = vunpack.c.h.b16 %v69
    %v149 = vunpack.c.l.b16 %v70
    %v150 = vunpack.c.h.b16 %v70
    %v151 = vunpack.c.l.b16 %v71
    %v152 = vunpack.c.h.b16 %v71
    %v153 = vunpack.c.l.b16 %v72
    %v154 = vunpack.c.h.b16 %v72
    %v155 = vunpack.c.l.b16 %v73
    %v156 = vunpack.c.h.b16 %v73
    %v157 = vunpack.c.l.b16 %v74
    %v158 = vunpack.c.h.b16 %v74
    %v159 = vunpack.c.l.b16 %v75
    %v160 = vunpack.c.h.b16 %v75
    %v161 = vunpack.c.l.b16 %v76
    %v162 = vunpack.c.h.b16 %v76
    %v163 = vunpack.c.l.b16 %v77
    %v164 = vunpack.c.h.b16 %v77
    %v165 = vunpack.c.l.b16 %v78
    %v166 = vunpack.c.h.b16 %v78
    %v167 = vunpack.c.l.b16 %v79
    %v168 = vunpack.c.h.b16 %v79
    %v169 = vunpack.c.l.b16 %v80
    %v170 = vunpack.c.h.b16 %v80
    %v171 = vunpack.c.l.b16 %v81
    %v172 = vunpack.c.h.b16 %v81
    %v173 = vunpack.c.l.b16 %v82
    %v174 = vunpack.c.h.b16 %v82
    %v175 = vunpack.c.l.b16 %v83
    %v176 = vunpack.c.h.b16 %v83
    %v177 = vunpack.c.l.b16 %v84
    %v178 = vunpack.c.h.b16 %v84
    %v179 = vunpack.c.l.b16 %v85
    %v180 = vunpack.c.h.b16 %v85
    %v181 = vunpack.c.l.b16 %v86
    %v182 = vunpack.c.h.b16 %v86
    %v183 = vunpack.c.l.b16 %v87
    %v184 = vunpack.c.h.b16 %v87
    %v185 = vunpack.c.l.b16 %v88
    %v186 = vunpack.c.h.b16 %v88
    %v187 = vunpack.c.l.b16 %v89
    %v188 = vunpack.c.h.b16 %v89
    %v189 = vunpack.c.l.b16 %v90
    %v190 = vunpack.c.h.b16 %v90
    %v191 = vunpack.c.l.b16 %v91
    %v192 = vunpack.c.h.b16 %v91
    %v193 = vunpack.c.l.b16 %v92
    %v194 = vunpack.c.h.b16 %v92
    %v195 = vunpack.c.l.b16 %v93
    %v196 = vunpack.c.h.b16 %v93
    %v197 = vunpack.c.l.b16 %v94
    %v198 = vunpack.c.h.b16 %v94
    %v199 = vunpack.c.l.b16 %v95
    %v200 = vunpack.c.h.b16 %v95
    %v201 = vunpack.c.l.b16 %v96
    %v202 = vunpack.c.h.b16 %v96
    %v203 = vpack.c.b16 %v143, %v139
    %v204 = vpack.c.b16 %v144, %v140
    %v205 = vpack.c.b16 %v145, %v141
    %v206 = vpack.c.b16 %v146, %v142
    %v207 = vpack.c.b16 %v151, %v147
    %v208 = vpack.c.b16 %v152, %v148
    %v209 = vpack.c.b16 %v153, %v149
    %v210 = vpack.c.b16 %v154, %v150
    %v211 = vpack.c.b16 %v159, %v155
    %v212 = vpack.c.b16 %v160, %v156
    %v213 = vpack.c.b16 %v161, %v157
    %v214 = vpack.c.b16 %v162, %v158
    %v215 = vpack.c.b16 %v167, %v163
    %v216 = vpack.c.b16 %v168, %v164
    %v217 = vpack.c.b16 %v169, %v165
    %v218 = vpack.c.b16 %v170, %v166
    %v219 = vpack.c.b16 %v175, %v171
    %v220 = vpack.c.b16 %v176, %v172
    %v221 = vpack.c.b16 %v177, %v173
    %v222 = vpack.c.b16 %v178, %v174
    %v223 = vpack.c.b16 %v183, %v179
    %v224 = vpack.c.b16 %v184, %v180
    %v225 = vpack.c.b16 %v185, %v181
    %v226 = vpack.c.b16 %v186, %v182
    %v227 = vpack.c.b16 %v191, %v187
    %v228 = vpack.c.b16 %v192, %v188
    %v229 = vpack.c.b16 %v193, %v189
    %v230 = vpack.c.b16 %v194, %v190
    %v231 = vpack.c.b16 %v199, %v195
    %v232 = vpack.c.b16 %v200, %v196
    %v233 = vpack.c.b16 %v201, %v197
    %v234 = vpack.c.b16 %v202, %v198
    %267 = vmatpush.bf16.msra.mxu0 %v231
    %268 = vmatpush.bf16.msra.mxu0 %v227
    %269 = vmatpush.bf16.msra.mxu0 %v223
    %270 = vmatpush.bf16.msra.mxu0 %v219
    %271 = vmatpush.bf16.msra.mxu0 %v215
    %272 = vmatpush.bf16.msra.mxu0 %v211
    %273 = vmatpush.bf16.msra.mxu0 %v207
    %274 = vmatpush.bf16.msra.mxu0 %v203
    %275 = vmatmul.bf16.gmra.mxu0 %v64
    %v276 = vpop.f32.mrf.mxu0
    %v277 = vadd.f32 %v99, %v276
    %v278 = vpop.f32.mrf.mxu0
    %279 = vdwg.mxu0
    %280 = vmatpush.bf16.msra.mxu0 %v232
    %281 = vmatpush.bf16.msra.mxu0 %v228
    %282 = vmatpush.bf16.msra.mxu0 %v224
    %283 = vmatpush.bf16.msra.mxu0 %v220
    %284 = vmatpush.bf16.msra.mxu0 %v216
    %285 = vmatpush.bf16.msra.mxu0 %v212
    %286 = vmatpush.bf16.msra.mxu0 %v208
    %287 = vmatpush.bf16.msra.mxu0 %v204
    %288 = vmatmul.bf16.gmra.mxu0 %v64
    %v289 = vpop.f32.mrf.mxu0
    %v290 = vadd.f32 %v100, %v289
    %v291 = vpop.f32.mrf.mxu0
    %292 = vdwg.mxu0
    %293 = vmatpush.bf16.msra.mxu0 %v233
    %294 = vmatpush.bf16.msra.mxu0 %v229
    %295 = vmatpush.bf16.msra.mxu0 %v225
    %296 = vmatpush.bf16.msra.mxu0 %v221
    %297 = vmatpush.bf16.msra.mxu0 %v217
    %298 = vmatpush.bf16.msra.mxu0 %v213
    %299 = vmatpush.bf16.msra.mxu0 %v209
    %300 = vmatpush.bf16.msra.mxu0 %v205
    %301 = vmatmul.bf16.gmra.mxu0 %v64
    %v302 = vpop.f32.mrf.mxu0
    %v303 = vadd.f32 %v101, %v302
    %v304 = vpop.f32.mrf.mxu0
    %305 = vdwg.mxu0
    %306 = vmatpush.bf16.msra.mxu0 %v234
    %307 = vmatpush.bf16.msra.mxu0 %v230
    %308 = vmatpush.bf16.msra.mxu0 %v226
    %309 = vmatpush.bf16.msra.mxu0 %v222
    %310 = vmatpush.bf16.msra.mxu0 %v218
    %311 = vmatpush.bf16.msra.mxu0 %v214
    %312 = vmatpush.bf16.msra.mxu0 %v210
    %313 = vmatpush.bf16.msra.mxu0 %v206
    %314 = vmatmul.bf16.gmra.mxu0 %v64
    %v315 = vpop.f32.mrf.mxu0
    %v316 = vadd.f32 %v102, %v315
    %v317 = vpop.f32.mrf.mxu0
    %318 = vdwg.mxu0
    %vm319 = vcmp.gt.f32.partialorder %v277, 0.0
    %vm320 = vcmp.gt.f32.partialorder %v290, 0.0
    %vm321 = vcmp.gt.f32.partialorder %v303, 0.0
    %vm322 = vcmp.gt.f32.partialorder %v316, 0.0
    %v323 = vmul.f32 %v277, 0.2
    %v324 = vmul.f32 %v290, 0.2
    %v325 = vmul.f32 %v303, 0.2
    %v326 = vmul.f32 %v316, 0.2
    %v327 = vsel %vm319, %v277, %v323
    %v328 = vsel %vm320, %v290, %v324
    %v329 = vsel %vm321, %v303, %v325
    %v330 = vsel %vm322, %v316, %v326
    %v331 = vpack.c.bf16 %v327, %v327
    %v332 = vpack.c.bf16 %v328, %v328
    %v333 = vpack.c.bf16 %v329, %v329
    %v334 = vpack.c.bf16 %v330, %v330
    %v335 = vld [vmem:[%s5] sm:$0xff]
    %v336 = vld [vmem:[%s5 + $0x8] sm:$0xff]
    %v337 = vld [vmem:[%s5 + $0x10] sm:$0xff]
    %v338 = vld [vmem:[%s5 + $0x18] sm:$0xf]
    %v339 = vld [vmem:[%s5 + $0x1c] sm:$0xff]
    %v340 = vld [vmem:[%s5 + $0x24] sm:$0xff]
    %v341 = vld [vmem:[%s5 + $0x2c] sm:$0xff]
    %v342 = vld [vmem:[%s5 + $0x34] sm:$0xf]
    %v343 = vld [vmem:[%s5 + $0x38] sm:$0xff]
    %v344 = vld [vmem:[%s5 + $0x40] sm:$0xff]
    %v345 = vld [vmem:[%s5 + $0x48] sm:$0xff]
    %v346 = vld [vmem:[%s5 + $0x50] sm:$0xf]
    %v347 = vld [vmem:[%s5 + $0x54] sm:$0xff]
    %v348 = vld [vmem:[%s5 + $0x5c] sm:$0xff]
    %v349 = vld [vmem:[%s5 + $0x64] sm:$0xff]
    %v350 = vld [vmem:[%s5 + $0x6c] sm:$0xf]
    %v351 = vld [vmem:[%s5 + $0x70] sm:$0xff]
    %v352 = vld [vmem:[%s5 + $0x78] sm:$0xff]
    %v353 = vld [vmem:[%s5 + $0x80] sm:$0xff]
    %v354 = vld [vmem:[%s5 + $0x88] sm:$0xf]
    %v355 = vld [vmem:[%s5 + $0x8c] sm:$0xff]
    %v356 = vld [vmem:[%s5 + $0x94] sm:$0xff]
    %v357 = vld [vmem:[%s5 + $0x9c] sm:$0xff]
    %v358 = vld [vmem:[%s5 + $0xa4] sm:$0xf]
    %v359 = vld [vmem:[%s5 + $0xa8] sm:$0xff]
    %v360 = vld [vmem:[%s5 + $0xb0] sm:$0xff]
    %v361 = vld [vmem:[%s5 + $0xb8] sm:$0xff]
    %v362 = vld [vmem:[%s5 + $0xc0] sm:$0xf]
    %v363 = vld [vmem:[%s5 + $0xc4] sm:$0xff]
    %v364 = vld [vmem:[%s5 + $0xcc] sm:$0xff]
    %v365 = vld [vmem:[%s5 + $0xd4] sm:$0xff]
    %v366 = vld [vmem:[%s5 + $0xdc] sm:$0xf]
    %v367 = vld [vmem:[%s5 + $0xe0] sm:$0xff]
    %v368 = vld [vmem:[%s5 + $0xe8] sm:$0xff]
    %v369 = vld [vmem:[%s5 + $0xf0] sm:$0xff]
    %v370 = vld [vmem:[%s5 + $0xf8] sm:$0xf]
    %v371 = vld [vmem:[%s5 + $0xfc] sm:$0xff]
    %v372 = vld [vmem:[%s5 + $0x104] sm:$0xff]
    %v373 = vld [vmem:[%s5 + $0x10c] sm:$0xff]
    %v374 = vld [vmem:[%s5 + $0x114] sm:$0xf]
    %v375 = vld [vmem:[%s5 + $0x118] sm:$0xff]
    %v376 = vld [vmem:[%s5 + $0x120] sm:$0xff]
    %v377 = vld [vmem:[%s5 + $0x128] sm:$0xff]
    %v378 = vld [vmem:[%s5 + $0x130] sm:$0xf]
    %v379 = vld [vmem:[%s5 + $0x134] sm:$0xff]
    %v380 = vld [vmem:[%s5 + $0x13c] sm:$0xff]
    %v381 = vld [vmem:[%s5 + $0x144] sm:$0xff]
    %v382 = vld [vmem:[%s5 + $0x14c] sm:$0xf]
    %v383 = vld [vmem:[%s5 + $0x150] sm:$0xff]
    %v384 = vld [vmem:[%s5 + $0x158] sm:$0xff]
    %v385 = vld [vmem:[%s5 + $0x160] sm:$0xff]
    %v386 = vld [vmem:[%s5 + $0x168] sm:$0xf]
    %v387 = vld [vmem:[%s5 + $0x16c] sm:$0xff]
    %v388 = vld [vmem:[%s5 + $0x174] sm:$0xff]
    %v389 = vld [vmem:[%s5 + $0x17c] sm:$0xff]
    %v390 = vld [vmem:[%s5 + $0x184] sm:$0xf]
    %v391 = vld [vmem:[%s5 + $0x188] sm:$0xff]
    %v392 = vld [vmem:[%s5 + $0x190] sm:$0xff]
    %v393 = vld [vmem:[%s5 + $0x198] sm:$0xff]
    %v394 = vld [vmem:[%s5 + $0x1a0] sm:$0xf]
    %v395 = vld [vmem:[%s5 + $0x1a4] sm:$0xff]
    %v396 = vld [vmem:[%s5 + $0x1ac] sm:$0xff]
    %v397 = vld [vmem:[%s5 + $0x1b4] sm:$0xff]
    %v398 = vld [vmem:[%s5 + $0x1bc] sm:$0xf]
    %v399 = vld [vmem:[%s5 + $0x1c0] sm:$0xff]
    %v400 = vld [vmem:[%s5 + $0x1c8] sm:$0xff]
    %v401 = vld [vmem:[%s5 + $0x1d0] sm:$0xff]
    %v402 = vld [vmem:[%s5 + $0x1d8] sm:$0xf]
    %v403 = vld [vmem:[%s5 + $0x1dc] sm:$0xff]
    %v404 = vld [vmem:[%s5 + $0x1e4] sm:$0xff]
    %v405 = vld [vmem:[%s5 + $0x1ec] sm:$0xff]
    %v406 = vld [vmem:[%s5 + $0x1f4] sm:$0xf]
    %v407 = vld [vmem:[%s5 + $0x1f8] sm:$0xff]
    %v408 = vld [vmem:[%s5 + $0x200] sm:$0xff]
    %v409 = vld [vmem:[%s5 + $0x208] sm:$0xff]
    %v410 = vld [vmem:[%s5 + $0x210] sm:$0xf]
    %v411 = vld [vmem:[%s5 + $0x214] sm:$0xff]
    %v412 = vld [vmem:[%s5 + $0x21c] sm:$0xff]
    %v413 = vld [vmem:[%s5 + $0x224] sm:$0xff]
    %v414 = vld [vmem:[%s5 + $0x22c] sm:$0xf]
    %v415 = vld [vmem:[%s5 + $0x230] sm:$0xff]
    %v416 = vld [vmem:[%s5 + $0x238] sm:$0xff]
    %v417 = vld [vmem:[%s5 + $0x240] sm:$0xff]
    %v418 = vld [vmem:[%s5 + $0x248] sm:$0xf]
    %v419 = vld [vmem:[%s5 + $0x24c] sm:$0xff]
    %v420 = vld [vmem:[%s5 + $0x254] sm:$0xff]
    %v421 = vld [vmem:[%s5 + $0x25c] sm:$0xff]
    %v422 = vld [vmem:[%s5 + $0x264] sm:$0xf]
    %v423 = vld [vmem:[%s5 + $0x268] sm:$0xff]
    %v424 = vld [vmem:[%s5 + $0x270] sm:$0xff]
    %v425 = vld [vmem:[%s5 + $0x278] sm:$0xff]
    %v426 = vld [vmem:[%s5 + $0x280] sm:$0xf]
    %v427 = vld [vmem:[%s5 + $0x284] sm:$0xff]
    %v428 = vld [vmem:[%s5 + $0x28c] sm:$0xff]
    %v429 = vld [vmem:[%s5 + $0x294] sm:$0xff]
    %v430 = vld [vmem:[%s5 + $0x29c] sm:$0xf]
    %v431 = vld [vmem:[%s5 + $0x2a0] sm:$0xff]
    %v432 = vld [vmem:[%s5 + $0x2a8] sm:$0xff]
    %v433 = vld [vmem:[%s5 + $0x2b0] sm:$0xff]
    %v434 = vld [vmem:[%s5 + $0x2b8] sm:$0xf]
    %v435 = vld [vmem:[%s5 + $0x2bc] sm:$0xff]
    %v436 = vld [vmem:[%s5 + $0x2c4] sm:$0xff]
    %v437 = vld [vmem:[%s5 + $0x2cc] sm:$0xff]
    %v438 = vld [vmem:[%s5 + $0x2d4] sm:$0xf]
    %v439 = vld [vmem:[%s5 + $0x2d8] sm:$0xff]
    %v440 = vld [vmem:[%s5 + $0x2e0] sm:$0xff]
    %v441 = vld [vmem:[%s5 + $0x2e8] sm:$0xff]
    %v442 = vld [vmem:[%s5 + $0x2f0] sm:$0xf]
    %v443 = vld [vmem:[%s5 + $0x2f4] sm:$0xff]
    %v444 = vld [vmem:[%s5 + $0x2fc] sm:$0xff]
    %v445 = vld [vmem:[%s5 + $0x304] sm:$0xff]
    %v446 = vld [vmem:[%s5 + $0x30c] sm:$0xf]
    %v447 = vld [vmem:[%s5 + $0x310] sm:$0xff]
    %v448 = vld [vmem:[%s5 + $0x318] sm:$0xff]
    %v449 = vld [vmem:[%s5 + $0x320] sm:$0xff]
    %v450 = vld [vmem:[%s5 + $0x328] sm:$0xf]
    %v451 = vld [vmem:[%s5 + $0x32c] sm:$0xff]
    %v452 = vld [vmem:[%s5 + $0x334] sm:$0xff]
    %v453 = vld [vmem:[%s5 + $0x33c] sm:$0xff]
    %v454 = vld [vmem:[%s5 + $0x344] sm:$0xf]
    %v455 = vld [vmem:[%s5 + $0x348] sm:$0xff]
    %v456 = vld [vmem:[%s5 + $0x350] sm:$0xff]
    %v457 = vld [vmem:[%s5 + $0x358] sm:$0xff]
    %v458 = vld [vmem:[%s5 + $0x360] sm:$0xf]
    %v459 = vld [vmem:[%s5 + $0x364] sm:$0xff]
    %v460 = vld [vmem:[%s5 + $0x36c] sm:$0xff]
    %v461 = vld [vmem:[%s5 + $0x374] sm:$0xff]
    %v462 = vld [vmem:[%s5 + $0x37c] sm:$0xf]
    %v463 = vld [vmem:[%s5 + $0x380] sm:$0xff]
    %v464 = vld [vmem:[%s5 + $0x388] sm:$0xff]
    %v465 = vld [vmem:[%s5 + $0x390] sm:$0xff]
    %v466 = vld [vmem:[%s5 + $0x398] sm:$0xf]
    %v467 = vld [vmem:[%s5 + $0x39c] sm:$0xff]
    %v468 = vld [vmem:[%s5 + $0x3a4] sm:$0xff]
    %v469 = vld [vmem:[%s5 + $0x3ac] sm:$0xff]
    %v470 = vld [vmem:[%s5 + $0x3b4] sm:$0xf]
    %v471 = vld [vmem:[%s5 + $0x3b8] sm:$0xff]
    %v472 = vld [vmem:[%s5 + $0x3c0] sm:$0xff]
    %v473 = vld [vmem:[%s5 + $0x3c8] sm:$0xff]
    %v474 = vld [vmem:[%s5 + $0x3d0] sm:$0xf]
    %v475 = vld [vmem:[%s5 + $0x3d4] sm:$0xff]
    %v476 = vld [vmem:[%s5 + $0x3dc] sm:$0xff]
    %v477 = vld [vmem:[%s5 + $0x3e4] sm:$0xff]
    %v478 = vld [vmem:[%s5 + $0x3ec] sm:$0xf]
    %v479 = vld [vmem:[%s5 + $0x3f0] sm:$0xff]
    %v480 = vld [vmem:[%s5 + $0x3f8] sm:$0xff]
    %v481 = vld [vmem:[%s5 + $0x400] sm:$0xff]
    %v482 = vld [vmem:[%s5 + $0x408] sm:$0xf]
    %v483 = vld [vmem:[%s5 + $0x40c] sm:$0xff]
    %v484 = vld [vmem:[%s5 + $0x414] sm:$0xff]
    %v485 = vld [vmem:[%s5 + $0x41c] sm:$0xff]
    %v486 = vld [vmem:[%s5 + $0x424] sm:$0xf]
    %v487 = vld [vmem:[%s5 + $0x428] sm:$0xff]
    %v488 = vld [vmem:[%s5 + $0x430] sm:$0xff]
    %v489 = vld [vmem:[%s5 + $0x438] sm:$0xff]
    %v490 = vld [vmem:[%s5 + $0x440] sm:$0xf]
    %v491 = vld [vmem:[%s5 + $0x444] sm:$0xff]
    %v492 = vld [vmem:[%s5 + $0x44c] sm:$0xff]
    %v493 = vld [vmem:[%s5 + $0x454] sm:$0xff]
    %v494 = vld [vmem:[%s5 + $0x45c] sm:$0xf]
    %v495 = vld [vmem:[%s5 + $0x460] sm:$0xff]
    %v496 = vld [vmem:[%s5 + $0x468] sm:$0xff]
    %v497 = vld [vmem:[%s5 + $0x470] sm:$0xff]
    %v498 = vld [vmem:[%s5 + $0x478] sm:$0xf]
    %v499 = vld [vmem:[%s5 + $0x47c] sm:$0xff]
    %v500 = vld [vmem:[%s5 + $0x484] sm:$0xff]
    %v501 = vld [vmem:[%s5 + $0x48c] sm:$0xff]
    %v502 = vld [vmem:[%s5 + $0x494] sm:$0xf]
    %v503 = vld [vmem:[%s5 + $0x498] sm:$0xff]
    %v504 = vld [vmem:[%s5 + $0x4a0] sm:$0xff]
    %v505 = vld [vmem:[%s5 + $0x4a8] sm:$0xff]
    %v506 = vld [vmem:[%s5 + $0x4b0] sm:$0xf]
    %v507 = vld [vmem:[%s5 + $0x4b4] sm:$0xff]
    %v508 = vld [vmem:[%s5 + $0x4bc] sm:$0xff]
    %v509 = vld [vmem:[%s5 + $0x4c4] sm:$0xff]
    %v510 = vld [vmem:[%s5 + $0x4cc] sm:$0xf]
    %v511 = vld [vmem:[%s5 + $0x4d0] sm:$0xff]
    %v512 = vld [vmem:[%s5 + $0x4d8] sm:$0xff]
    %v513 = vld [vmem:[%s5 + $0x4e0] sm:$0xff]
    %v514 = vld [vmem:[%s5 + $0x4e8] sm:$0xf]
    %v515 = vld [vmem:[%s5 + $0x4ec] sm:$0xff]
    %v516 = vld [vmem:[%s5 + $0x4f4] sm:$0xff]
    %v517 = vld [vmem:[%s5 + $0x4fc] sm:$0xff]
    %v518 = vld [vmem:[%s5 + $0x504] sm:$0xf]
    %v519 = vld [vmem:[%s5 + $0x508] sm:$0xff]
    %v520 = vld [vmem:[%s5 + $0x510] sm:$0xff]
    %v521 = vld [vmem:[%s5 + $0x518] sm:$0xff]
    %v522 = vld [vmem:[%s5 + $0x520] sm:$0xf]
    %v523 = vld [vmem:[%s5 + $0x524] sm:$0xff]
    %v524 = vld [vmem:[%s5 + $0x52c] sm:$0xff]
    %v525 = vld [vmem:[%s5 + $0x534] sm:$0xff]
    %v526 = vld [vmem:[%s5 + $0x53c] sm:$0xf]
    %v527 = vld [vmem:[%s5 + $0x540] sm:$0xff]
    %v528 = vld [vmem:[%s5 + $0x548] sm:$0xff]
    %v529 = vld [vmem:[%s5 + $0x550] sm:$0xff]
    %v530 = vld [vmem:[%s5 + $0x558] sm:$0xf]
    %v531 = vld [vmem:[%s5 + $0x55c] sm:$0xff]
    %v532 = vld [vmem:[%s5 + $0x564] sm:$0xff]
    %v533 = vld [vmem:[%s5 + $0x56c] sm:$0xff]
    %v534 = vld [vmem:[%s5 + $0x574] sm:$0xf]
    %v535 = vld [vmem:[%s5 + $0x578] sm:$0xff]
    %v536 = vld [vmem:[%s5 + $0x580] sm:$0xff]
    %v537 = vld [vmem:[%s5 + $0x588] sm:$0xff]
    %v538 = vld [vmem:[%s5 + $0x590] sm:$0xf]
    %v539 = vld [vmem:[%s5 + $0x594] sm:$0xff]
    %v540 = vld [vmem:[%s5 + $0x59c] sm:$0xff]
    %v541 = vld [vmem:[%s5 + $0x5a4] sm:$0xff]
    %v542 = vld [vmem:[%s5 + $0x5ac] sm:$0xf]
    %v543 = vld [vmem:[%s5 + $0x5b0] sm:$0xff]
    %v544 = vld [vmem:[%s5 + $0x5b8] sm:$0xff]
    %v545 = vld [vmem:[%s5 + $0x5c0] sm:$0xff]
    %v546 = vld [vmem:[%s5 + $0x5c8] sm:$0xf]
    %v547 = vld [vmem:[%s5 + $0x5cc] sm:$0xff]
    %v548 = vld [vmem:[%s5 + $0x5d4] sm:$0xff]
    %v549 = vld [vmem:[%s5 + $0x5dc] sm:$0xff]
    %v550 = vld [vmem:[%s5 + $0x5e4] sm:$0xf]
    %v551 = vld [vmem:[%s5 + $0x5e8] sm:$0xff]
    %v552 = vld [vmem:[%s5 + $0x5f0] sm:$0xff]
    %v553 = vld [vmem:[%s5 + $0x5f8] sm:$0xff]
    %v554 = vld [vmem:[%s5 + $0x600] sm:$0xf]
    %v555 = vld [vmem:[%s5 + $0x604] sm:$0xff]
    %v556 = vld [vmem:[%s5 + $0x60c] sm:$0xff]
    %v557 = vld [vmem:[%s5 + $0x614] sm:$0xff]
    %v558 = vld [vmem:[%s5 + $0x61c] sm:$0xf]
    %v559 = vld [vmem:[%s5 + $0x620] sm:$0xff]
    %v560 = vld [vmem:[%s5 + $0x628] sm:$0xff]
    %v561 = vld [vmem:[%s5 + $0x630] sm:$0xff]
    %v562 = vld [vmem:[%s5 + $0x638] sm:$0xf]
    %v563 = vld [vmem:[%s5 + $0x63c] sm:$0xff]
    %v564 = vld [vmem:[%s5 + $0x644] sm:$0xff]
    %v565 = vld [vmem:[%s5 + $0x64c] sm:$0xff]
    %v566 = vld [vmem:[%s5 + $0x654] sm:$0xf]
    %v567 = vld [vmem:[%s5 + $0x658] sm:$0xff]
    %v568 = vld [vmem:[%s5 + $0x660] sm:$0xff]
    %v569 = vld [vmem:[%s5 + $0x668] sm:$0xff]
    %v570 = vld [vmem:[%s5 + $0x670] sm:$0xf]
    %v571 = vld [vmem:[%s5 + $0x674] sm:$0xff]
    %v572 = vld [vmem:[%s5 + $0x67c] sm:$0xff]
    %v573 = vld [vmem:[%s5 + $0x684] sm:$0xff]
    %v574 = vld [vmem:[%s5 + $0x68c] sm:$0xf]
    %v575 = vld [vmem:[%s5 + $0x690] sm:$0xff]
    %v576 = vld [vmem:[%s5 + $0x698] sm:$0xff]
    %v577 = vld [vmem:[%s5 + $0x6a0] sm:$0xff]
    %v578 = vld [vmem:[%s5 + $0x6a8] sm:$0xf]
    %v579 = vld [vmem:[%s5 + $0x6ac] sm:$0xff]
    %v580 = vld [vmem:[%s5 + $0x6b4] sm:$0xff]
    %v581 = vld [vmem:[%s5 + $0x6bc] sm:$0xff]
    %v582 = vld [vmem:[%s5 + $0x6c4] sm:$0xf]
    %v583 = vld [vmem:[%s5 + $0x6c8] sm:$0xff]
    %v584 = vld [vmem:[%s5 + $0x6d0] sm:$0xff]
    %v585 = vld [vmem:[%s5 + $0x6d8] sm:$0xff]
    %v586 = vld [vmem:[%s5 + $0x6e0] sm:$0xf]
    %v587 = vld [vmem:[%s5 + $0x6e4] sm:$0xff]
    %v588 = vld [vmem:[%s5 + $0x6ec] sm:$0xff]
    %v589 = vld [vmem:[%s5 + $0x6f4] sm:$0xff]
    %v590 = vld [vmem:[%s5 + $0x6fc] sm:$0xf]
    %v591 = vld [vmem:[%s6] sm:$0xff]
    %v593 = vperm.slane %v591, 0
    %v594 = vperm.slane %v591, 1
    %v595 = vperm.slane %v591, 2
    %v596 = vperm.slane %v591, 3
    %v597 = vperm.slane %v591, 4
    %v598 = vperm.slane %v591, 5
    %v599 = vperm.slane %v591, 6
    %v863 = vunpack.c.l.b16 %v335
    %v864 = vunpack.c.h.b16 %v335
    %v865 = vunpack.c.l.b16 %v336
    %v866 = vunpack.c.h.b16 %v336
    %v867 = vunpack.c.l.b16 %v337
    %v868 = vunpack.c.h.b16 %v337
    %v869 = vunpack.c.l.b16 %v338
    %v870 = vunpack.c.l.b16 %v339
    %v871 = vunpack.c.h.b16 %v339
    %v872 = vunpack.c.l.b16 %v340
    %v873 = vunpack.c.h.b16 %v340
    %v874 = vunpack.c.l.b16 %v341
    %v875 = vunpack.c.h.b16 %v341
    %v876 = vunpack.c.l.b16 %v342
    %v877 = vunpack.c.l.b16 %v343
    %v878 = vunpack.c.h.b16 %v343
    %v879 = vunpack.c.l.b16 %v344
    %v880 = vunpack.c.h.b16 %v344
    %v881 = vunpack.c.l.b16 %v345
    %v882 = vunpack.c.h.b16 %v345
    %v883 = vunpack.c.l.b16 %v346
    %v884 = vunpack.c.l.b16 %v347
    %v885 = vunpack.c.h.b16 %v347
    %v886 = vunpack.c.l.b16 %v348
    %v887 = vunpack.c.h.b16 %v348
    %v888 = vunpack.c.l.b16 %v349
    %v889 = vunpack.c.h.b16 %v349
    %v890 = vunpack.c.l.b16 %v350
    %v891 = vunpack.c.l.b16 %v351
    %v892 = vunpack.c.h.b16 %v351
    %v893 = vunpack.c.l.b16 %v352
    %v894 = vunpack.c.h.b16 %v352
    %v895 = vunpack.c.l.b16 %v353
    %v896 = vunpack.c.h.b16 %v353
    %v897 = vunpack.c.l.b16 %v354
    %v898 = vunpack.c.l.b16 %v355
    %v899 = vunpack.c.h.b16 %v355
    %v900 = vunpack.c.l.b16 %v356
    %v901 = vunpack.c.h.b16 %v356
    %v902 = vunpack.c.l.b16 %v357
    %v903 = vunpack.c.h.b16 %v357
    %v904 = vunpack.c.l.b16 %v358
    %v905 = vunpack.c.l.b16 %v359
    %v906 = vunpack.c.h.b16 %v359
    %v907 = vunpack.c.l.b16 %v360
    %v908 = vunpack.c.h.b16 %v360
    %v909 = vunpack.c.l.b16 %v361
    %v910 = vunpack.c.h.b16 %v361
    %v911 = vunpack.c.l.b16 %v362
    %v912 = vunpack.c.l.b16 %v363
    %v913 = vunpack.c.h.b16 %v363
    %v914 = vunpack.c.l.b16 %v364
    %v915 = vunpack.c.h.b16 %v364
    %v916 = vunpack.c.l.b16 %v365
    %v917 = vunpack.c.h.b16 %v365
    %v918 = vunpack.c.l.b16 %v366
    %v919 = vunpack.c.l.b16 %v367
    %v920 = vunpack.c.h.b16 %v367
    %v921 = vunpack.c.l.b16 %v368
    %v922 = vunpack.c.h.b16 %v368
    %v923 = vunpack.c.l.b16 %v369
    %v924 = vunpack.c.h.b16 %v369
    %v925 = vunpack.c.l.b16 %v370
    %v926 = vunpack.c.l.b16 %v371
    %v927 = vunpack.c.h.b16 %v371
    %v928 = vunpack.c.l.b16 %v372
    %v929 = vunpack.c.h.b16 %v372
    %v930 = vunpack.c.l.b16 %v373
    %v931 = vunpack.c.h.b16 %v373
    %v932 = vunpack.c.l.b16 %v374
    %v933 = vunpack.c.l.b16 %v375
    %v934 = vunpack.c.h.b16 %v375
    %v935 = vunpack.c.l.b16 %v376
    %v936 = vunpack.c.h.b16 %v376
    %v937 = vunpack.c.l.b16 %v377
    %v938 = vunpack.c.h.b16 %v377
    %v939 = vunpack.c.l.b16 %v378
    %v940 = vunpack.c.l.b16 %v379
    %v941 = vunpack.c.h.b16 %v379
    %v942 = vunpack.c.l.b16 %v380
    %v943 = vunpack.c.h.b16 %v380
    %v944 = vunpack.c.l.b16 %v381
    %v945 = vunpack.c.h.b16 %v381
    %v946 = vunpack.c.l.b16 %v382
    %v947 = vunpack.c.l.b16 %v383
    %v948 = vunpack.c.h.b16 %v383
    %v949 = vunpack.c.l.b16 %v384
    %v950 = vunpack.c.h.b16 %v384
    %v951 = vunpack.c.l.b16 %v385
    %v952 = vunpack.c.h.b16 %v385
    %v953 = vunpack.c.l.b16 %v386
    %v954 = vunpack.c.l.b16 %v387
    %v955 = vunpack.c.h.b16 %v387
    %v956 = vunpack.c.l.b16 %v388
    %v957 = vunpack.c.h.b16 %v388
    %v958 = vunpack.c.l.b16 %v389
    %v959 = vunpack.c.h.b16 %v389
    %v960 = vunpack.c.l.b16 %v390
    %v961 = vunpack.c.l.b16 %v391
    %v962 = vunpack.c.h.b16 %v391
    %v963 = vunpack.c.l.b16 %v392
    %v964 = vunpack.c.h.b16 %v392
    %v965 = vunpack.c.l.b16 %v393
    %v966 = vunpack.c.h.b16 %v393
    %v967 = vunpack.c.l.b16 %v394
    %v968 = vunpack.c.l.b16 %v395
    %v969 = vunpack.c.h.b16 %v395
    %v970 = vunpack.c.l.b16 %v396
    %v971 = vunpack.c.h.b16 %v396
    %v972 = vunpack.c.l.b16 %v397
    %v973 = vunpack.c.h.b16 %v397
    %v974 = vunpack.c.l.b16 %v398
    %v975 = vunpack.c.l.b16 %v399
    %v976 = vunpack.c.h.b16 %v399
    %v977 = vunpack.c.l.b16 %v400
    %v978 = vunpack.c.h.b16 %v400
    %v979 = vunpack.c.l.b16 %v401
    %v980 = vunpack.c.h.b16 %v401
    %v981 = vunpack.c.l.b16 %v402
    %v982 = vunpack.c.l.b16 %v403
    %v983 = vunpack.c.h.b16 %v403
    %v984 = vunpack.c.l.b16 %v404
    %v985 = vunpack.c.h.b16 %v404
    %v986 = vunpack.c.l.b16 %v405
    %v987 = vunpack.c.h.b16 %v405
    %v988 = vunpack.c.l.b16 %v406
    %v989 = vunpack.c.l.b16 %v407
    %v990 = vunpack.c.h.b16 %v407
    %v991 = vunpack.c.l.b16 %v408
    %v992 = vunpack.c.h.b16 %v408
    %v993 = vunpack.c.l.b16 %v409
    %v994 = vunpack.c.h.b16 %v409
    %v995 = vunpack.c.l.b16 %v410
    %v996 = vunpack.c.l.b16 %v411
    %v997 = vunpack.c.h.b16 %v411
    %v998 = vunpack.c.l.b16 %v412
    %v999 = vunpack.c.h.b16 %v412
    %v1000 = vunpack.c.l.b16 %v413
    %v1001 = vunpack.c.h.b16 %v413
    %v1002 = vunpack.c.l.b16 %v414
    %v1003 = vunpack.c.l.b16 %v415
    %v1004 = vunpack.c.h.b16 %v415
    %v1005 = vunpack.c.l.b16 %v416
    %v1006 = vunpack.c.h.b16 %v416
    %v1007 = vunpack.c.l.b16 %v417
    %v1008 = vunpack.c.h.b16 %v417
    %v1009 = vunpack.c.l.b16 %v418
    %v1010 = vunpack.c.l.b16 %v419
    %v1011 = vunpack.c.h.b16 %v419
    %v1012 = vunpack.c.l.b16 %v420
    %v1013 = vunpack.c.h.b16 %v420
    %v1014 = vunpack.c.l.b16 %v421
    %v1015 = vunpack.c.h.b16 %v421
    %v1016 = vunpack.c.l.b16 %v422
    %v1017 = vunpack.c.l.b16 %v423
    %v1018 = vunpack.c.h.b16 %v423
    %v1019 = vunpack.c.l.b16 %v424
    %v1020 = vunpack.c.h.b16 %v424
    %v1021 = vunpack.c.l.b16 %v425
    %v1022 = vunpack.c.h.b16 %v425
    %v1023 = vunpack.c.l.b16 %v426
    %v1024 = vunpack.c.l.b16 %v427
    %v1025 = vunpack.c.h.b16 %v427
    %v1026 = vunpack.c.l.b16 %v428
    %v1027 = vunpack.c.h.b16 %v428
    %v1028 = vunpack.c.l.b16 %v429
    %v1029 = vunpack.c.h.b16 %v429
    %v1030 = vunpack.c.l.b16 %v430
    %v1031 = vunpack.c.l.b16 %v431
    %v1032 = vunpack.c.h.b16 %v431
    %v1033 = vunpack.c.l.b16 %v432
    %v1034 = vunpack.c.h.b16 %v432
    %v1035 = vunpack.c.l.b16 %v433
    %v1036 = vunpack.c.h.b16 %v433
    %v1037 = vunpack.c.l.b16 %v434
    %v1038 = vunpack.c.l.b16 %v435
    %v1039 = vunpack.c.h.b16 %v435
    %v1040 = vunpack.c.l.b16 %v436
    %v1041 = vunpack.c.h.b16 %v436
    %v1042 = vunpack.c.l.b16 %v437
    %v1043 = vunpack.c.h.b16 %v437
    %v1044 = vunpack.c.l.b16 %v438
    %v1045 = vunpack.c.l.b16 %v439
    %v1046 = vunpack.c.h.b16 %v439
    %v1047 = vunpack.c.l.b16 %v440
    %v1048 = vunpack.c.h.b16 %v440
    %v1049 = vunpack.c.l.b16 %v441
    %v1050 = vunpack.c.h.b16 %v441
    %v1051 = vunpack.c.l.b16 %v442
    %v1052 = vunpack.c.l.b16 %v443
    %v1053 = vunpack.c.h.b16 %v443
    %v1054 = vunpack.c.l.b16 %v444
    %v1055 = vunpack.c.h.b16 %v444
    %v1056 = vunpack.c.l.b16 %v445
    %v1057 = vunpack.c.h.b16 %v445
    %v1058 = vunpack.c.l.b16 %v446
    %v1059 = vunpack.c.l.b16 %v447
    %v1060 = vunpack.c.h.b16 %v447
    %v1061 = vunpack.c.l.b16 %v448
    %v1062 = vunpack.c.h.b16 %v448
    %v1063 = vunpack.c.l.b16 %v449
    %v1064 = vunpack.c.h.b16 %v449
    %v1065 = vunpack.c.l.b16 %v450
    %v1066 = vunpack.c.l.b16 %v451
    %v1067 = vunpack.c.h.b16 %v451
    %v1068 = vunpack.c.l.b16 %v452
    %v1069 = vunpack.c.h.b16 %v452
    %v1070 = vunpack.c.l.b16 %v453
    %v1071 = vunpack.c.h.b16 %v453
    %v1072 = vunpack.c.l.b16 %v454
    %v1073 = vunpack.c.l.b16 %v455
    %v1074 = vunpack.c.h.b16 %v455
    %v1075 = vunpack.c.l.b16 %v456
    %v1076 = vunpack.c.h.b16 %v456
    %v1077 = vunpack.c.l.b16 %v457
    %v1078 = vunpack.c.h.b16 %v457
    %v1079 = vunpack.c.l.b16 %v458
    %v1080 = vunpack.c.l.b16 %v459
    %v1081 = vunpack.c.h.b16 %v459
    %v1082 = vunpack.c.l.b16 %v460
    %v1083 = vunpack.c.h.b16 %v460
    %v1084 = vunpack.c.l.b16 %v461
    %v1085 = vunpack.c.h.b16 %v461
    %v1086 = vunpack.c.l.b16 %v462
    %v1087 = vunpack.c.l.b16 %v463
    %v1088 = vunpack.c.h.b16 %v463
    %v1089 = vunpack.c.l.b16 %v464
    %v1090 = vunpack.c.h.b16 %v464
    %v1091 = vunpack.c.l.b16 %v465
    %v1092 = vunpack.c.h.b16 %v465
    %v1093 = vunpack.c.l.b16 %v466
    %v1094 = vunpack.c.l.b16 %v467
    %v1095 = vunpack.c.h.b16 %v467
    %v1096 = vunpack.c.l.b16 %v468
    %v1097 = vunpack.c.h.b16 %v468
    %v1098 = vunpack.c.l.b16 %v469
    %v1099 = vunpack.c.h.b16 %v469
    %v1100 = vunpack.c.l.b16 %v470
    %v1101 = vunpack.c.l.b16 %v471
    %v1102 = vunpack.c.h.b16 %v471
    %v1103 = vunpack.c.l.b16 %v472
    %v1104 = vunpack.c.h.b16 %v472
    %v1105 = vunpack.c.l.b16 %v473
    %v1106 = vunpack.c.h.b16 %v473
    %v1107 = vunpack.c.l.b16 %v474
    %v1108 = vunpack.c.l.b16 %v475
    %v1109 = vunpack.c.h.b16 %v475
    %v1110 = vunpack.c.l.b16 %v476
    %v1111 = vunpack.c.h.b16 %v476
    %v1112 = vunpack.c.l.b16 %v477
    %v1113 = vunpack.c.h.b16 %v477
    %v1114 = vunpack.c.l.b16 %v478
    %v1115 = vunpack.c.l.b16 %v479
    %v1116 = vunpack.c.h.b16 %v479
    %v1117 = vunpack.c.l.b16 %v480
    %v1118 = vunpack.c.h.b16 %v480
    %v1119 = vunpack.c.l.b16 %v481
    %v1120 = vunpack.c.h.b16 %v481
    %v1121 = vunpack.c.l.b16 %v482
    %v1122 = vunpack.c.l.b16 %v483
    %v1123 = vunpack.c.h.b16 %v483
    %v1124 = vunpack.c.l.b16 %v484
    %v1125 = vunpack.c.h.b16 %v484
    %v1126 = vunpack.c.l.b16 %v485
    %v1127 = vunpack.c.h.b16 %v485
    %v1128 = vunpack.c.l.b16 %v486
    %v1129 = vunpack.c.l.b16 %v487
    %v1130 = vunpack.c.h.b16 %v487
    %v1131 = vunpack.c.l.b16 %v488
    %v1132 = vunpack.c.h.b16 %v488
    %v1133 = vunpack.c.l.b16 %v489
    %v1134 = vunpack.c.h.b16 %v489
    %v1135 = vunpack.c.l.b16 %v490
    %v1136 = vunpack.c.l.b16 %v491
    %v1137 = vunpack.c.h.b16 %v491
    %v1138 = vunpack.c.l.b16 %v492
    %v1139 = vunpack.c.h.b16 %v492
    %v1140 = vunpack.c.l.b16 %v493
    %v1141 = vunpack.c.h.b16 %v493
    %v1142 = vunpack.c.l.b16 %v494
    %v1143 = vunpack.c.l.b16 %v495
    %v1144 = vunpack.c.h.b16 %v495
    %v1145 = vunpack.c.l.b16 %v496
    %v1146 = vunpack.c.h.b16 %v496
    %v1147 = vunpack.c.l.b16 %v497
    %v1148 = vunpack.c.h.b16 %v497
    %v1149 = vunpack.c.l.b16 %v498
    %v1150 = vunpack.c.l.b16 %v499
    %v1151 = vunpack.c.h.b16 %v499
    %v1152 = vunpack.c.l.b16 %v500
    %v1153 = vunpack.c.h.b16 %v500
    %v1154 = vunpack.c.l.b16 %v501
    %v1155 = vunpack.c.h.b16 %v501
    %v1156 = vunpack.c.l.b16 %v502
    %v1157 = vunpack.c.l.b16 %v503
    %v1158 = vunpack.c.h.b16 %v503
    %v1159 = vunpack.c.l.b16 %v504
    %v1160 = vunpack.c.h.b16 %v504
    %v1161 = vunpack.c.l.b16 %v505
    %v1162 = vunpack.c.h.b16 %v505
    %v1163 = vunpack.c.l.b16 %v506
    %v1164 = vunpack.c.l.b16 %v507
    %v1165 = vunpack.c.h.b16 %v507
    %v1166 = vunpack.c.l.b16 %v508
    %v1167 = vunpack.c.h.b16 %v508
    %v1168 = vunpack.c.l.b16 %v509
    %v1169 = vunpack.c.h.b16 %v509
    %v1170 = vunpack.c.l.b16 %v510
    %v1171 = vunpack.c.l.b16 %v511
    %v1172 = vunpack.c.h.b16 %v511
    %v1173 = vunpack.c.l.b16 %v512
    %v1174 = vunpack.c.h.b16 %v512
    %v1175 = vunpack.c.l.b16 %v513
    %v1176 = vunpack.c.h.b16 %v513
    %v1177 = vunpack.c.l.b16 %v514
    %v1178 = vunpack.c.l.b16 %v515
    %v1179 = vunpack.c.h.b16 %v515
    %v1180 = vunpack.c.l.b16 %v516
    %v1181 = vunpack.c.h.b16 %v516
    %v1182 = vunpack.c.l.b16 %v517
    %v1183 = vunpack.c.h.b16 %v517
    %v1184 = vunpack.c.l.b16 %v518
    %v1185 = vunpack.c.l.b16 %v519
    %v1186 = vunpack.c.h.b16 %v519
    %v1187 = vunpack.c.l.b16 %v520
    %v1188 = vunpack.c.h.b16 %v520
    %v1189 = vunpack.c.l.b16 %v521
    %v1190 = vunpack.c.h.b16 %v521
    %v1191 = vunpack.c.l.b16 %v522
    %v1192 = vunpack.c.l.b16 %v523
    %v1193 = vunpack.c.h.b16 %v523
    %v1194 = vunpack.c.l.b16 %v524
    %v1195 = vunpack.c.h.b16 %v524
    %v1196 = vunpack.c.l.b16 %v525
    %v1197 = vunpack.c.h.b16 %v525
    %v1198 = vunpack.c.l.b16 %v526
    %v1199 = vunpack.c.l.b16 %v527
    %v1200 = vunpack.c.h.b16 %v527
    %v1201 = vunpack.c.l.b16 %v528
    %v1202 = vunpack.c.h.b16 %v528
    %v1203 = vunpack.c.l.b16 %v529
    %v1204 = vunpack.c.h.b16 %v529
    %v1205 = vunpack.c.l.b16 %v530
    %v1206 = vunpack.c.l.b16 %v531
    %v1207 = vunpack.c.h.b16 %v531
    %v1208 = vunpack.c.l.b16 %v532
    %v1209 = vunpack.c.h.b16 %v532
    %v1210 = vunpack.c.l.b16 %v533
    %v1211 = vunpack.c.h.b16 %v533
    %v1212 = vunpack.c.l.b16 %v534
    %v1213 = vunpack.c.l.b16 %v535
    %v1214 = vunpack.c.h.b16 %v535
    %v1215 = vunpack.c.l.b16 %v536
    %v1216 = vunpack.c.h.b16 %v536
    %v1217 = vunpack.c.l.b16 %v537
    %v1218 = vunpack.c.h.b16 %v537
    %v1219 = vunpack.c.l.b16 %v538
    %v1220 = vunpack.c.l.b16 %v539
    %v1221 = vunpack.c.h.b16 %v539
    %v1222 = vunpack.c.l.b16 %v540
    %v1223 = vunpack.c.h.b16 %v540
    %v1224 = vunpack.c.l.b16 %v541
    %v1225 = vunpack.c.h.b16 %v541
    %v1226 = vunpack.c.l.b16 %v542
    %v1227 = vunpack.c.l.b16 %v543
    %v1228 = vunpack.c.h.b16 %v543
    %v1229 = vunpack.c.l.b16 %v544
    %v1230 = vunpack.c.h.b16 %v544
    %v1231 = vunpack.c.l.b16 %v545
    %v1232 = vunpack.c.h.b16 %v545
    %v1233 = vunpack.c.l.b16 %v546
    %v1234 = vunpack.c.l.b16 %v547
    %v1235 = vunpack.c.h.b16 %v547
    %v1236 = vunpack.c.l.b16 %v548
    %v1237 = vunpack.c.h.b16 %v548
    %v1238 = vunpack.c.l.b16 %v549
    %v1239 = vunpack.c.h.b16 %v549
    %v1240 = vunpack.c.l.b16 %v550
    %v1241 = vunpack.c.l.b16 %v551
    %v1242 = vunpack.c.h.b16 %v551
    %v1243 = vunpack.c.l.b16 %v552
    %v1244 = vunpack.c.h.b16 %v552
    %v1245 = vunpack.c.l.b16 %v553
    %v1246 = vunpack.c.h.b16 %v553
    %v1247 = vunpack.c.l.b16 %v554
    %v1248 = vunpack.c.l.b16 %v555
    %v1249 = vunpack.c.h.b16 %v555
    %v1250 = vunpack.c.l.b16 %v556
    %v1251 = vunpack.c.h.b16 %v556
    %v1252 = vunpack.c.l.b16 %v557
    %v1253 = vunpack.c.h.b16 %v557
    %v1254 = vunpack.c.l.b16 %v558
    %v1255 = vunpack.c.l.b16 %v559
    %v1256 = vunpack.c.h.b16 %v559
    %v1257 = vunpack.c.l.b16 %v560
    %v1258 = vunpack.c.h.b16 %v560
    %v1259 = vunpack.c.l.b16 %v561
    %v1260 = vunpack.c.h.b16 %v561
    %v1261 = vunpack.c.l.b16 %v562
    %v1262 = vunpack.c.l.b16 %v563
    %v1263 = vunpack.c.h.b16 %v563
    %v1264 = vunpack.c.l.b16 %v564
    %v1265 = vunpack.c.h.b16 %v564
    %v1266 = vunpack.c.l.b16 %v565
    %v1267 = vunpack.c.h.b16 %v565
    %v1268 = vunpack.c.l.b16 %v566
    %v1269 = vunpack.c.l.b16 %v567
    %v1270 = vunpack.c.h.b16 %v567
    %v1271 = vunpack.c.l.b16 %v568
    %v1272 = vunpack.c.h.b16 %v568
    %v1273 = vunpack.c.l.b16 %v569
    %v1274 = vunpack.c.h.b16 %v569
    %v1275 = vunpack.c.l.b16 %v570
    %v1276 = vunpack.c.l.b16 %v571
    %v1277 = vunpack.c.h.b16 %v571
    %v1278 = vunpack.c.l.b16 %v572
    %v1279 = vunpack.c.h.b16 %v572
    %v1280 = vunpack.c.l.b16 %v573
    %v1281 = vunpack.c.h.b16 %v573
    %v1282 = vunpack.c.l.b16 %v574
    %v1283 = vunpack.c.l.b16 %v575
    %v1284 = vunpack.c.h.b16 %v575
    %v1285 = vunpack.c.l.b16 %v576
    %v1286 = vunpack.c.h.b16 %v576
    %v1287 = vunpack.c.l.b16 %v577
    %v1288 = vunpack.c.h.b16 %v577
    %v1289 = vunpack.c.l.b16 %v578
    %v1290 = vunpack.c.l.b16 %v579
    %v1291 = vunpack.c.h.b16 %v579
    %v1292 = vunpack.c.l.b16 %v580
    %v1293 = vunpack.c.h.b16 %v580
    %v1294 = vunpack.c.l.b16 %v581
    %v1295 = vunpack.c.h.b16 %v581
    %v1296 = vunpack.c.l.b16 %v582
    %v1297 = vunpack.c.l.b16 %v583
    %v1298 = vunpack.c.h.b16 %v583
    %v1299 = vunpack.c.l.b16 %v584
    %v1300 = vunpack.c.h.b16 %v584
    %v1301 = vunpack.c.l.b16 %v585
    %v1302 = vunpack.c.h.b16 %v585
    %v1303 = vunpack.c.l.b16 %v586
    %v1304 = vunpack.c.l.b16 %v587
    %v1305 = vunpack.c.h.b16 %v587
    %v1306 = vunpack.c.l.b16 %v588
    %v1307 = vunpack.c.h.b16 %v588
    %v1308 = vunpack.c.l.b16 %v589
    %v1309 = vunpack.c.h.b16 %v589
    %v1310 = vunpack.c.l.b16 %v590
    %v1311 = vpack.c.b16 %v870, %v863
    %v1312 = vpack.c.b16 %v871, %v864
    %v1313 = vpack.c.b16 %v872, %v865
    %v1314 = vpack.c.b16 %v873, %v866
    %v1315 = vpack.c.b16 %v874, %v867
    %v1316 = vpack.c.b16 %v875, %v868
    %v1317 = vpack.c.b16 %v876, %v869
    %v1318 = vpack.c.b16 %v884, %v877
    %v1319 = vpack.c.b16 %v885, %v878
    %v1320 = vpack.c.b16 %v886, %v879
    %v1321 = vpack.c.b16 %v887, %v880
    %v1322 = vpack.c.b16 %v888, %v881
    %v1323 = vpack.c.b16 %v889, %v882
    %v1324 = vpack.c.b16 %v890, %v883
    %v1325 = vpack.c.b16 %v898, %v891
    %v1326 = vpack.c.b16 %v899, %v892
    %v1327 = vpack.c.b16 %v900, %v893
    %v1328 = vpack.c.b16 %v901, %v894
    %v1329 = vpack.c.b16 %v902, %v895
    %v1330 = vpack.c.b16 %v903, %v896
    %v1331 = vpack.c.b16 %v904, %v897
    %v1332 = vpack.c.b16 %v912, %v905
    %v1333 = vpack.c.b16 %v913, %v906
    %v1334 = vpack.c.b16 %v914, %v907
    %v1335 = vpack.c.b16 %v915, %v908
    %v1336 = vpack.c.b16 %v916, %v909
    %v1337 = vpack.c.b16 %v917, %v910
    %v1338 = vpack.c.b16 %v918, %v911
    %v1339 = vpack.c.b16 %v926, %v919
    %v1340 = vpack.c.b16 %v927, %v920
    %v1341 = vpack.c.b16 %v928, %v921
    %v1342 = vpack.c.b16 %v929, %v922
    %v1343 = vpack.c.b16 %v930, %v923
    %v1344 = vpack.c.b16 %v931, %v924
    %v1345 = vpack.c.b16 %v932, %v925
    %v1346 = vpack.c.b16 %v940, %v933
    %v1347 = vpack.c.b16 %v941, %v934
    %v1348 = vpack.c.b16 %v942, %v935
    %v1349 = vpack.c.b16 %v943, %v936
    %v1350 = vpack.c.b16 %v944, %v937
    %v1351 = vpack.c.b16 %v945, %v938
    %v1352 = vpack.c.b16 %v946, %v939
    %v1353 = vpack.c.b16 %v954, %v947
    %v1354 = vpack.c.b16 %v955, %v948
    %v1355 = vpack.c.b16 %v956, %v949
    %v1356 = vpack.c.b16 %v957, %v950
    %v1357 = vpack.c.b16 %v958, %v951
    %v1358 = vpack.c.b16 %v959, %v952
    %v1359 = vpack.c.b16 %v960, %v953
    %v1360 = vpack.c.b16 %v968, %v961
    %v1361 = vpack.c.b16 %v969, %v962
    %v1362 = vpack.c.b16 %v970, %v963
    %v1363 = vpack.c.b16 %v971, %v964
    %v1364 = vpack.c.b16 %v972, %v965
    %v1365 = vpack.c.b16 %v973, %v966
    %v1366 = vpack.c.b16 %v974, %v967
    %v1367 = vpack.c.b16 %v982, %v975
    %v1368 = vpack.c.b16 %v983, %v976
    %v1369 = vpack.c.b16 %v984, %v977
    %v1370 = vpack.c.b16 %v985, %v978
    %v1371 = vpack.c.b16 %v986, %v979
    %v1372 = vpack.c.b16 %v987, %v980
    %v1373 = vpack.c.b16 %v988, %v981
    %v1374 = vpack.c.b16 %v996, %v989
    %v1375 = vpack.c.b16 %v997, %v990
    %v1376 = vpack.c.b16 %v998, %v991
    %v1377 = vpack.c.b16 %v999, %v992
    %v1378 = vpack.c.b16 %v1000, %v993
    %v1379 = vpack.c.b16 %v1001, %v994
    %v1380 = vpack.c.b16 %v1002, %v995
    %v1381 = vpack.c.b16 %v1010, %v1003
    %v1382 = vpack.c.b16 %v1011, %v1004
    %v1383 = vpack.c.b16 %v1012, %v1005
    %v1384 = vpack.c.b16 %v1013, %v1006
    %v1385 = vpack.c.b16 %v1014, %v1007
    %v1386 = vpack.c.b16 %v1015, %v1008
    %v1387 = vpack.c.b16 %v1016, %v1009
    %v1388 = vpack.c.b16 %v1024, %v1017
    %v1389 = vpack.c.b16 %v1025, %v1018
    %v1390 = vpack.c.b16 %v1026, %v1019
    %v1391 = vpack.c.b16 %v1027, %v1020
    %v1392 = vpack.c.b16 %v1028, %v1021
    %v1393 = vpack.c.b16 %v1029, %v1022
    %v1394 = vpack.c.b16 %v1030, %v1023
    %v1395 = vpack.c.b16 %v1038, %v1031
    %v1396 = vpack.c.b16 %v1039, %v1032
    %v1397 = vpack.c.b16 %v1040, %v1033
    %v1398 = vpack.c.b16 %v1041, %v1034
    %v1399 = vpack.c.b16 %v1042, %v1035
    %v1400 = vpack.c.b16 %v1043, %v1036
    %v1401 = vpack.c.b16 %v1044, %v1037
    %v1402 = vpack.c.b16 %v1052, %v1045
    %v1403 = vpack.c.b16 %v1053, %v1046
    %v1404 = vpack.c.b16 %v1054, %v1047
    %v1405 = vpack.c.b16 %v1055, %v1048
    %v1406 = vpack.c.b16 %v1056, %v1049
    %v1407 = vpack.c.b16 %v1057, %v1050
    %v1408 = vpack.c.b16 %v1058, %v1051
    %v1409 = vpack.c.b16 %v1066, %v1059
    %v1410 = vpack.c.b16 %v1067, %v1060
    %v1411 = vpack.c.b16 %v1068, %v1061
    %v1412 = vpack.c.b16 %v1069, %v1062
    %v1413 = vpack.c.b16 %v1070, %v1063
    %v1414 = vpack.c.b16 %v1071, %v1064
    %v1415 = vpack.c.b16 %v1072, %v1065
    %v1416 = vpack.c.b16 %v1080, %v1073
    %v1417 = vpack.c.b16 %v1081, %v1074
    %v1418 = vpack.c.b16 %v1082, %v1075
    %v1419 = vpack.c.b16 %v1083, %v1076
    %v1420 = vpack.c.b16 %v1084, %v1077
    %v1421 = vpack.c.b16 %v1085, %v1078
    %v1422 = vpack.c.b16 %v1086, %v1079
    %v1423 = vpack.c.b16 %v1094, %v1087
    %v1424 = vpack.c.b16 %v1095, %v1088
    %v1425 = vpack.c.b16 %v1096, %v1089
    %v1426 = vpack.c.b16 %v1097, %v1090
    %v1427 = vpack.c.b16 %v1098, %v1091
    %v1428 = vpack.c.b16 %v1099, %v1092
    %v1429 = vpack.c.b16 %v1100, %v1093
    %v1430 = vpack.c.b16 %v1108, %v1101
    %v1431 = vpack.c.b16 %v1109, %v1102
    %v1432 = vpack.c.b16 %v1110, %v1103
    %v1433 = vpack.c.b16 %v1111, %v1104
    %v1434 = vpack.c.b16 %v1112, %v1105
    %v1435 = vpack.c.b16 %v1113, %v1106
    %v1436 = vpack.c.b16 %v1114, %v1107
    %v1437 = vpack.c.b16 %v1122, %v1115
    %v1438 = vpack.c.b16 %v1123, %v1116
    %v1439 = vpack.c.b16 %v1124, %v1117
    %v1440 = vpack.c.b16 %v1125, %v1118
    %v1441 = vpack.c.b16 %v1126, %v1119
    %v1442 = vpack.c.b16 %v1127, %v1120
    %v1443 = vpack.c.b16 %v1128, %v1121
    %v1444 = vpack.c.b16 %v1136, %v1129
    %v1445 = vpack.c.b16 %v1137, %v1130
    %v1446 = vpack.c.b16 %v1138, %v1131
    %v1447 = vpack.c.b16 %v1139, %v1132
    %v1448 = vpack.c.b16 %v1140, %v1133
    %v1449 = vpack.c.b16 %v1141, %v1134
    %v1450 = vpack.c.b16 %v1142, %v1135
    %v1451 = vpack.c.b16 %v1150, %v1143
    %v1452 = vpack.c.b16 %v1151, %v1144
    %v1453 = vpack.c.b16 %v1152, %v1145
    %v1454 = vpack.c.b16 %v1153, %v1146
    %v1455 = vpack.c.b16 %v1154, %v1147
    %v1456 = vpack.c.b16 %v1155, %v1148
    %v1457 = vpack.c.b16 %v1156, %v1149
    %v1458 = vpack.c.b16 %v1164, %v1157
    %v1459 = vpack.c.b16 %v1165, %v1158
    %v1460 = vpack.c.b16 %v1166, %v1159
    %v1461 = vpack.c.b16 %v1167, %v1160
    %v1462 = vpack.c.b16 %v1168, %v1161
    %v1463 = vpack.c.b16 %v1169, %v1162
    %v1464 = vpack.c.b16 %v1170, %v1163
    %v1465 = vpack.c.b16 %v1178, %v1171
    %v1466 = vpack.c.b16 %v1179, %v1172
    %v1467 = vpack.c.b16 %v1180, %v1173
    %v1468 = vpack.c.b16 %v1181, %v1174
    %v1469 = vpack.c.b16 %v1182, %v1175
    %v1470 = vpack.c.b16 %v1183, %v1176
    %v1471 = vpack.c.b16 %v1184, %v1177
    %v1472 = vpack.c.b16 %v1192, %v1185
    %v1473 = vpack.c.b16 %v1193, %v1186
    %v1474 = vpack.c.b16 %v1194, %v1187
    %v1475 = vpack.c.b16 %v1195, %v1188
    %v1476 = vpack.c.b16 %v1196, %v1189
    %v1477 = vpack.c.b16 %v1197, %v1190
    %v1478 = vpack.c.b16 %v1198, %v1191
    %v1479 = vpack.c.b16 %v1206, %v1199
    %v1480 = vpack.c.b16 %v1207, %v1200
    %v1481 = vpack.c.b16 %v1208, %v1201
    %v1482 = vpack.c.b16 %v1209, %v1202
    %v1483 = vpack.c.b16 %v1210, %v1203
    %v1484 = vpack.c.b16 %v1211, %v1204
    %v1485 = vpack.c.b16 %v1212, %v1205
    %v1486 = vpack.c.b16 %v1220, %v1213
    %v1487 = vpack.c.b16 %v1221, %v1214
    %v1488 = vpack.c.b16 %v1222, %v1215
    %v1489 = vpack.c.b16 %v1223, %v1216
    %v1490 = vpack.c.b16 %v1224, %v1217
    %v1491 = vpack.c.b16 %v1225, %v1218
    %v1492 = vpack.c.b16 %v1226, %v1219
    %v1493 = vpack.c.b16 %v1234, %v1227
    %v1494 = vpack.c.b16 %v1235, %v1228
    %v1495 = vpack.c.b16 %v1236, %v1229
    %v1496 = vpack.c.b16 %v1237, %v1230
    %v1497 = vpack.c.b16 %v1238, %v1231
    %v1498 = vpack.c.b16 %v1239, %v1232
    %v1499 = vpack.c.b16 %v1240, %v1233
    %v1500 = vpack.c.b16 %v1248, %v1241
    %v1501 = vpack.c.b16 %v1249, %v1242
    %v1502 = vpack.c.b16 %v1250, %v1243
    %v1503 = vpack.c.b16 %v1251, %v1244
    %v1504 = vpack.c.b16 %v1252, %v1245
    %v1505 = vpack.c.b16 %v1253, %v1246
    %v1506 = vpack.c.b16 %v1254, %v1247
    %v1507 = vpack.c.b16 %v1262, %v1255
    %v1508 = vpack.c.b16 %v1263, %v1256
    %v1509 = vpack.c.b16 %v1264, %v1257
    %v1510 = vpack.c.b16 %v1265, %v1258
    %v1511 = vpack.c.b16 %v1266, %v1259
    %v1512 = vpack.c.b16 %v1267, %v1260
    %v1513 = vpack.c.b16 %v1268, %v1261
    %v1514 = vpack.c.b16 %v1276, %v1269
    %v1515 = vpack.c.b16 %v1277, %v1270
    %v1516 = vpack.c.b16 %v1278, %v1271
    %v1517 = vpack.c.b16 %v1279, %v1272
    %v1518 = vpack.c.b16 %v1280, %v1273
    %v1519 = vpack.c.b16 %v1281, %v1274
    %v1520 = vpack.c.b16 %v1282, %v1275
    %v1521 = vpack.c.b16 %v1290, %v1283
    %v1522 = vpack.c.b16 %v1291, %v1284
    %v1523 = vpack.c.b16 %v1292, %v1285
    %v1524 = vpack.c.b16 %v1293, %v1286
    %v1525 = vpack.c.b16 %v1294, %v1287
    %v1526 = vpack.c.b16 %v1295, %v1288
    %v1527 = vpack.c.b16 %v1296, %v1289
    %v1528 = vpack.c.b16 %v1304, %v1297
    %v1529 = vpack.c.b16 %v1305, %v1298
    %v1530 = vpack.c.b16 %v1306, %v1299
    %v1531 = vpack.c.b16 %v1307, %v1300
    %v1532 = vpack.c.b16 %v1308, %v1301
    %v1533 = vpack.c.b16 %v1309, %v1302
    %v1534 = vpack.c.b16 %v1310, %v1303
    %1759 = vmatpush.bf16.msra.mxu0 %v1360
    %1760 = vmatpush.bf16.msra.mxu0 %v1353
    %1761 = vmatpush.bf16.msra.mxu0 %v1346
    %1762 = vmatpush.bf16.msra.mxu0 %v1339
    %1763 = vmatpush.bf16.msra.mxu0 %v1332
    %1764 = vmatpush.bf16.msra.mxu0 %v1325
    %1765 = vmatpush.bf16.msra.mxu0 %v1318
    %1766 = vmatpush.bf16.msra.mxu0 %v1311
    %1767 = vmatmul.bf16.gmra.mxu0 %v331
    %v1768 = vpop.f32.mrf.mxu0
    %v1769 = vadd.f32 %v593, %v1768
    %v1770 = vpop.f32.mrf.mxu0
    %1771 = vdwg.mxu0
    %1772 = vmatpush.bf16.msra.mxu0 %v1416
    %1773 = vmatpush.bf16.msra.mxu0 %v1409
    %1774 = vmatpush.bf16.msra.mxu0 %v1402
    %1775 = vmatpush.bf16.msra.mxu0 %v1395
    %1776 = vmatpush.bf16.msra.mxu0 %v1388
    %1777 = vmatpush.bf16.msra.mxu0 %v1381
    %1778 = vmatpush.bf16.msra.mxu0 %v1374
    %1779 = vmatpush.bf16.msra.mxu0 %v1367
    %1780 = vmatmul.bf16.gmra.mxu0 %v332
    %v1781 = vpop.f32.mrf.mxu0
    %v1782 = vadd.f32 %v1769, %v1781
    %v1783 = vpop.f32.mrf.mxu0
    %1784 = vdwg.mxu0
    %1785 = vmatpush.bf16.msra.mxu0 %v1472
    %1786 = vmatpush.bf16.msra.mxu0 %v1465
    %1787 = vmatpush.bf16.msra.mxu0 %v1458
    %1788 = vmatpush.bf16.msra.mxu0 %v1451
    %1789 = vmatpush.bf16.msra.mxu0 %v1444
    %1790 = vmatpush.bf16.msra.mxu0 %v1437
    %1791 = vmatpush.bf16.msra.mxu0 %v1430
    %1792 = vmatpush.bf16.msra.mxu0 %v1423
    %1793 = vmatmul.bf16.gmra.mxu0 %v333
    %v1794 = vpop.f32.mrf.mxu0
    %v1795 = vadd.f32 %v1782, %v1794
    %v1796 = vpop.f32.mrf.mxu0
    %1797 = vdwg.mxu0
    %1798 = vmatpush.bf16.msra.mxu0 %v1528
    %1799 = vmatpush.bf16.msra.mxu0 %v1521
    %1800 = vmatpush.bf16.msra.mxu0 %v1514
    %1801 = vmatpush.bf16.msra.mxu0 %v1507
    %1802 = vmatpush.bf16.msra.mxu0 %v1500
    %1803 = vmatpush.bf16.msra.mxu0 %v1493
    %1804 = vmatpush.bf16.msra.mxu0 %v1486
    %1805 = vmatpush.bf16.msra.mxu0 %v1479
    %1806 = vmatmul.bf16.gmra.mxu0 %v334
    %v1807 = vpop.f32.mrf.mxu0
    %v1808 = vadd.f32 %v1795, %v1807
    %v1809 = vpop.f32.mrf.mxu0
    %1810 = vdwg.mxu0
    %1811 = vmatpush.bf16.msra.mxu0 %v1361
    %1812 = vmatpush.bf16.msra.mxu0 %v1354
    %1813 = vmatpush.bf16.msra.mxu0 %v1347
    %1814 = vmatpush.bf16.msra.mxu0 %v1340
    %1815 = vmatpush.bf16.msra.mxu0 %v1333
    %1816 = vmatpush.bf16.msra.mxu0 %v1326
    %1817 = vmatpush.bf16.msra.mxu0 %v1319
    %1818 = vmatpush.bf16.msra.mxu0 %v1312
    %1819 = vmatmul.bf16.gmra.mxu0 %v331
    %v1820 = vpop.f32.mrf.mxu0
    %v1821 = vadd.f32 %v594, %v1820
    %v1822 = vpop.f32.mrf.mxu0
    %1823 = vdwg.mxu0
    %1824 = vmatpush.bf16.msra.mxu0 %v1417
    %1825 = vmatpush.bf16.msra.mxu0 %v1410
    %1826 = vmatpush.bf16.msra.mxu0 %v1403
    %1827 = vmatpush.bf16.msra.mxu0 %v1396
    %1828 = vmatpush.bf16.msra.mxu0 %v1389
    %1829 = vmatpush.bf16.msra.mxu0 %v1382
    %1830 = vmatpush.bf16.msra.mxu0 %v1375
    %1831 = vmatpush.bf16.msra.mxu0 %v1368
    %1832 = vmatmul.bf16.gmra.mxu0 %v332
    %v1833 = vpop.f32.mrf.mxu0
    %v1834 = vadd.f32 %v1821, %v1833
    %v1835 = vpop.f32.mrf.mxu0
    %1836 = vdwg.mxu0
    %1837 = vmatpush.bf16.msra.mxu0 %v1473
    %1838 = vmatpush.bf16.msra.mxu0 %v1466
    %1839 = vmatpush.bf16.msra.mxu0 %v1459
    %1840 = vmatpush.bf16.msra.mxu0 %v1452
    %1841 = vmatpush.bf16.msra.mxu0 %v1445
    %1842 = vmatpush.bf16.msra.mxu0 %v1438
    %1843 = vmatpush.bf16.msra.mxu0 %v1431
    %1844 = vmatpush.bf16.msra.mxu0 %v1424
    %1845 = vmatmul.bf16.gmra.mxu0 %v333
    %v1846 = vpop.f32.mrf.mxu0
    %v1847 = vadd.f32 %v1834, %v1846
    %v1848 = vpop.f32.mrf.mxu0
    %1849 = vdwg.mxu0
    %1850 = vmatpush.bf16.msra.mxu0 %v1529
    %1851 = vmatpush.bf16.msra.mxu0 %v1522
    %1852 = vmatpush.bf16.msra.mxu0 %v1515
    %1853 = vmatpush.bf16.msra.mxu0 %v1508
    %1854 = vmatpush.bf16.msra.mxu0 %v1501
    %1855 = vmatpush.bf16.msra.mxu0 %v1494
    %1856 = vmatpush.bf16.msra.mxu0 %v1487
    %1857 = vmatpush.bf16.msra.mxu0 %v1480
    %1858 = vmatmul.bf16.gmra.mxu0 %v334
    %v1859 = vpop.f32.mrf.mxu0
    %v1860 = vadd.f32 %v1847, %v1859
    %v1861 = vpop.f32.mrf.mxu0
    %1862 = vdwg.mxu0
    %1863 = vmatpush.bf16.msra.mxu0 %v1362
    %1864 = vmatpush.bf16.msra.mxu0 %v1355
    %1865 = vmatpush.bf16.msra.mxu0 %v1348
    %1866 = vmatpush.bf16.msra.mxu0 %v1341
    %1867 = vmatpush.bf16.msra.mxu0 %v1334
    %1868 = vmatpush.bf16.msra.mxu0 %v1327
    %1869 = vmatpush.bf16.msra.mxu0 %v1320
    %1870 = vmatpush.bf16.msra.mxu0 %v1313
    %1871 = vmatmul.bf16.gmra.mxu0 %v331
    %v1872 = vpop.f32.mrf.mxu0
    %v1873 = vadd.f32 %v595, %v1872
    %v1874 = vpop.f32.mrf.mxu0
    %1875 = vdwg.mxu0
    %1876 = vmatpush.bf16.msra.mxu0 %v1418
    %1877 = vmatpush.bf16.msra.mxu0 %v1411
    %1878 = vmatpush.bf16.msra.mxu0 %v1404
    %1879 = vmatpush.bf16.msra.mxu0 %v1397
    %1880 = vmatpush.bf16.msra.mxu0 %v1390
    %1881 = vmatpush.bf16.msra.mxu0 %v1383
    %1882 = vmatpush.bf16.msra.mxu0 %v1376
    %1883 = vmatpush.bf16.msra.mxu0 %v1369
    %1884 = vmatmul.bf16.gmra.mxu0 %v332
    %v1885 = vpop.f32.mrf.mxu0
    %v1886 = vadd.f32 %v1873, %v1885
    %v1887 = vpop.f32.mrf.mxu0
    %1888 = vdwg.mxu0
    %1889 = vmatpush.bf16.msra.mxu0 %v1474
    %1890 = vmatpush.bf16.msra.mxu0 %v1467
    %1891 = vmatpush.bf16.msra.mxu0 %v1460
    %1892 = vmatpush.bf16.msra.mxu0 %v1453
    %1893 = vmatpush.bf16.msra.mxu0 %v1446
    %1894 = vmatpush.bf16.msra.mxu0 %v1439
    %1895 = vmatpush.bf16.msra.mxu0 %v1432
    %1896 = vmatpush.bf16.msra.mxu0 %v1425
    %1897 = vmatmul.bf16.gmra.mxu0 %v333
    %v1898 = vpop.f32.mrf.mxu0
    %v1899 = vadd.f32 %v1886, %v1898
    %v1900 = vpop.f32.mrf.mxu0
    %1901 = vdwg.mxu0
    %1902 = vmatpush.bf16.msra.mxu0 %v1530
    %1903 = vmatpush.bf16.msra.mxu0 %v1523
    %1904 = vmatpush.bf16.msra.mxu0 %v1516
    %1905 = vmatpush.bf16.msra.mxu0 %v1509
    %1906 = vmatpush.bf16.msra.mxu0 %v1502
    %1907 = vmatpush.bf16.msra.mxu0 %v1495
    %1908 = vmatpush.bf16.msra.mxu0 %v1488
    %1909 = vmatpush.bf16.msra.mxu0 %v1481
    %1910 = vmatmul.bf16.gmra.mxu0 %v334
    %v1911 = vpop.f32.mrf.mxu0
    %v1912 = vadd.f32 %v1899, %v1911
    %v1913 = vpop.f32.mrf.mxu0
    %1914 = vdwg.mxu0
    %1915 = vmatpush.bf16.msra.mxu0 %v1363
    %1916 = vmatpush.bf16.msra.mxu0 %v1356
    %1917 = vmatpush.bf16.msra.mxu0 %v1349
    %1918 = vmatpush.bf16.msra.mxu0 %v1342
    %1919 = vmatpush.bf16.msra.mxu0 %v1335
    %1920 = vmatpush.bf16.msra.mxu0 %v1328
    %1921 = vmatpush.bf16.msra.mxu0 %v1321
    %1922 = vmatpush.bf16.msra.mxu0 %v1314
    %1923 = vmatmul.bf16.gmra.mxu0 %v331
    %v1924 = vpop.f32.mrf.mxu0
    %v1925 = vadd.f32 %v596, %v1924
    %v1926 = vpop.f32.mrf.mxu0
    %1927 = vdwg.mxu0
    %1928 = vmatpush.bf16.msra.mxu0 %v1419
    %1929 = vmatpush.bf16.msra.mxu0 %v1412
    %1930 = vmatpush.bf16.msra.mxu0 %v1405
    %1931 = vmatpush.bf16.msra.mxu0 %v1398
    %1932 = vmatpush.bf16.msra.mxu0 %v1391
    %1933 = vmatpush.bf16.msra.mxu0 %v1384
    %1934 = vmatpush.bf16.msra.mxu0 %v1377
    %1935 = vmatpush.bf16.msra.mxu0 %v1370
    %1936 = vmatmul.bf16.gmra.mxu0 %v332
    %v1937 = vpop.f32.mrf.mxu0
    %v1938 = vadd.f32 %v1925, %v1937
    %v1939 = vpop.f32.mrf.mxu0
    %1940 = vdwg.mxu0
    %1941 = vmatpush.bf16.msra.mxu0 %v1475
    %1942 = vmatpush.bf16.msra.mxu0 %v1468
    %1943 = vmatpush.bf16.msra.mxu0 %v1461
    %1944 = vmatpush.bf16.msra.mxu0 %v1454
    %1945 = vmatpush.bf16.msra.mxu0 %v1447
    %1946 = vmatpush.bf16.msra.mxu0 %v1440
    %1947 = vmatpush.bf16.msra.mxu0 %v1433
    %1948 = vmatpush.bf16.msra.mxu0 %v1426
    %1949 = vmatmul.bf16.gmra.mxu0 %v333
    %v1950 = vpop.f32.mrf.mxu0
    %v1951 = vadd.f32 %v1938, %v1950
    %v1952 = vpop.f32.mrf.mxu0
    %1953 = vdwg.mxu0
    %1954 = vmatpush.bf16.msra.mxu0 %v1531
    %1955 = vmatpush.bf16.msra.mxu0 %v1524
    %1956 = vmatpush.bf16.msra.mxu0 %v1517
    %1957 = vmatpush.bf16.msra.mxu0 %v1510
    %1958 = vmatpush.bf16.msra.mxu0 %v1503
    %1959 = vmatpush.bf16.msra.mxu0 %v1496
    %1960 = vmatpush.bf16.msra.mxu0 %v1489
    %1961 = vmatpush.bf16.msra.mxu0 %v1482
    %1962 = vmatmul.bf16.gmra.mxu0 %v334
    %v1963 = vpop.f32.mrf.mxu0
    %v1964 = vadd.f32 %v1951, %v1963
    %v1965 = vpop.f32.mrf.mxu0
    %1966 = vdwg.mxu0
    %1967 = vmatpush.bf16.msra.mxu0 %v1364
    %1968 = vmatpush.bf16.msra.mxu0 %v1357
    %1969 = vmatpush.bf16.msra.mxu0 %v1350
    %1970 = vmatpush.bf16.msra.mxu0 %v1343
    %1971 = vmatpush.bf16.msra.mxu0 %v1336
    %1972 = vmatpush.bf16.msra.mxu0 %v1329
    %1973 = vmatpush.bf16.msra.mxu0 %v1322
    %1974 = vmatpush.bf16.msra.mxu0 %v1315
    %1975 = vmatmul.bf16.gmra.mxu0 %v331
    %v1976 = vpop.f32.mrf.mxu0
    %v1977 = vadd.f32 %v597, %v1976
    %v1978 = vpop.f32.mrf.mxu0
    %1979 = vdwg.mxu0
    %1980 = vmatpush.bf16.msra.mxu0 %v1420
    %1981 = vmatpush.bf16.msra.mxu0 %v1413
    %1982 = vmatpush.bf16.msra.mxu0 %v1406
    %1983 = vmatpush.bf16.msra.mxu0 %v1399
    %1984 = vmatpush.bf16.msra.mxu0 %v1392
    %1985 = vmatpush.bf16.msra.mxu0 %v1385
    %1986 = vmatpush.bf16.msra.mxu0 %v1378
    %1987 = vmatpush.bf16.msra.mxu0 %v1371
    %1988 = vmatmul.bf16.gmra.mxu0 %v332
    %v1989 = vpop.f32.mrf.mxu0
    %v1990 = vadd.f32 %v1977, %v1989
    %v1991 = vpop.f32.mrf.mxu0
    %1992 = vdwg.mxu0
    %1993 = vmatpush.bf16.msra.mxu0 %v1476
    %1994 = vmatpush.bf16.msra.mxu0 %v1469
    %1995 = vmatpush.bf16.msra.mxu0 %v1462
    %1996 = vmatpush.bf16.msra.mxu0 %v1455
    %1997 = vmatpush.bf16.msra.mxu0 %v1448
    %1998 = vmatpush.bf16.msra.mxu0 %v1441
    %1999 = vmatpush.bf16.msra.mxu0 %v1434
    %2000 = vmatpush.bf16.msra.mxu0 %v1427
    %2001 = vmatmul.bf16.gmra.mxu0 %v333
    %v2002 = vpop.f32.mrf.mxu0
    %v2003 = vadd.f32 %v1990, %v2002
    %v2004 = vpop.f32.mrf.mxu0
    %2005 = vdwg.mxu0
    %2006 = vmatpush.bf16.msra.mxu0 %v1532
    %2007 = vmatpush.bf16.msra.mxu0 %v1525
    %2008 = vmatpush.bf16.msra.mxu0 %v1518
    %2009 = vmatpush.bf16.msra.mxu0 %v1511
    %2010 = vmatpush.bf16.msra.mxu0 %v1504
    %2011 = vmatpush.bf16.msra.mxu0 %v1497
    %2012 = vmatpush.bf16.msra.mxu0 %v1490
    %2013 = vmatpush.bf16.msra.mxu0 %v1483
    %2014 = vmatmul.bf16.gmra.mxu0 %v334
    %v2015 = vpop.f32.mrf.mxu0
    %v2016 = vadd.f32 %v2003, %v2015
    %v2017 = vpop.f32.mrf.mxu0
    %2018 = vdwg.mxu0
    %2019 = vmatpush.bf16.msra.mxu0 %v1365
    %2020 = vmatpush.bf16.msra.mxu0 %v1358
    %2021 = vmatpush.bf16.msra.mxu0 %v1351
    %2022 = vmatpush.bf16.msra.mxu0 %v1344
    %2023 = vmatpush.bf16.msra.mxu0 %v1337
    %2024 = vmatpush.bf16.msra.mxu0 %v1330
    %2025 = vmatpush.bf16.msra.mxu0 %v1323
    %2026 = vmatpush.bf16.msra.mxu0 %v1316
    %2027 = vmatmul.bf16.gmra.mxu0 %v331
    %v2028 = vpop.f32.mrf.mxu0
    %v2029 = vadd.f32 %v598, %v2028
    %v2030 = vpop.f32.mrf.mxu0
    %2031 = vdwg.mxu0
    %2032 = vmatpush.bf16.msra.mxu0 %v1421
    %2033 = vmatpush.bf16.msra.mxu0 %v1414
    %2034 = vmatpush.bf16.msra.mxu0 %v1407
    %2035 = vmatpush.bf16.msra.mxu0 %v1400
    %2036 = vmatpush.bf16.msra.mxu0 %v1393
    %2037 = vmatpush.bf16.msra.mxu0 %v1386
    %2038 = vmatpush.bf16.msra.mxu0 %v1379
    %2039 = vmatpush.bf16.msra.mxu0 %v1372
    %2040 = vmatmul.bf16.gmra.mxu0 %v332
    %v2041 = vpop.f32.mrf.mxu0
    %v2042 = vadd.f32 %v2029, %v2041
    %v2043 = vpop.f32.mrf.mxu0
    %2044 = vdwg.mxu0
    %2045 = vmatpush.bf16.msra.mxu0 %v1477
    %2046 = vmatpush.bf16.msra.mxu0 %v1470
    %2047 = vmatpush.bf16.msra.mxu0 %v1463
    %2048 = vmatpush.bf16.msra.mxu0 %v1456
    %2049 = vmatpush.bf16.msra.mxu0 %v1449
    %2050 = vmatpush.bf16.msra.mxu0 %v1442
    %2051 = vmatpush.bf16.msra.mxu0 %v1435
    %2052 = vmatpush.bf16.msra.mxu0 %v1428
    %2053 = vmatmul.bf16.gmra.mxu0 %v333
    %v2054 = vpop.f32.mrf.mxu0
    %v2055 = vadd.f32 %v2042, %v2054
    %v2056 = vpop.f32.mrf.mxu0
    %2057 = vdwg.mxu0
    %2058 = vmatpush.bf16.msra.mxu0 %v1533
    %2059 = vmatpush.bf16.msra.mxu0 %v1526
    %2060 = vmatpush.bf16.msra.mxu0 %v1519
    %2061 = vmatpush.bf16.msra.mxu0 %v1512
    %2062 = vmatpush.bf16.msra.mxu0 %v1505
    %2063 = vmatpush.bf16.msra.mxu0 %v1498
    %2064 = vmatpush.bf16.msra.mxu0 %v1491
    %2065 = vmatpush.bf16.msra.mxu0 %v1484
    %2066 = vmatmul.bf16.gmra.mxu0 %v334
    %v2067 = vpop.f32.mrf.mxu0
    %v2068 = vadd.f32 %v2055, %v2067
    %v2069 = vpop.f32.mrf.mxu0
    %2070 = vdwg.mxu0
    %2071 = vmatpush.bf16.msra.mxu0 %v1366
    %2072 = vmatpush.bf16.msra.mxu0 %v1359
    %2073 = vmatpush.bf16.msra.mxu0 %v1352
    %2074 = vmatpush.bf16.msra.mxu0 %v1345
    %2075 = vmatpush.bf16.msra.mxu0 %v1338
    %2076 = vmatpush.bf16.msra.mxu0 %v1331
    %2077 = vmatpush.bf16.msra.mxu0 %v1324
    %2078 = vmatpush.bf16.msra.mxu0 %v1317
    %2079 = vmatmul.bf16.gmra.mxu0 %v331
    %v2080 = vpop.f32.mrf.mxu0
    %v2081 = vadd.f32 %v599, %v2080
    %v2082 = vpop.f32.mrf.mxu0
    %2083 = vdwg.mxu0
    %2084 = vmatpush.bf16.msra.mxu0 %v1422
    %2085 = vmatpush.bf16.msra.mxu0 %v1415
    %2086 = vmatpush.bf16.msra.mxu0 %v1408
    %2087 = vmatpush.bf16.msra.mxu0 %v1401
    %2088 = vmatpush.bf16.msra.mxu0 %v1394
    %2089 = vmatpush.bf16.msra.mxu0 %v1387
    %2090 = vmatpush.bf16.msra.mxu0 %v1380
    %2091 = vmatpush.bf16.msra.mxu0 %v1373
    %2092 = vmatmul.bf16.gmra.mxu0 %v332
    %v2093 = vpop.f32.mrf.mxu0
    %v2094 = vadd.f32 %v2081, %v2093
    %v2095 = vpop.f32.mrf.mxu0
    %2096 = vdwg.mxu0
    %2097 = vmatpush.bf16.msra.mxu0 %v1478
    %2098 = vmatpush.bf16.msra.mxu0 %v1471
    %2099 = vmatpush.bf16.msra.mxu0 %v1464
    %2100 = vmatpush.bf16.msra.mxu0 %v1457
    %2101 = vmatpush.bf16.msra.mxu0 %v1450
    %2102 = vmatpush.bf16.msra.mxu0 %v1443
    %2103 = vmatpush.bf16.msra.mxu0 %v1436
    %2104 = vmatpush.bf16.msra.mxu0 %v1429
    %2105 = vmatmul.bf16.gmra.mxu0 %v333
    %v2106 = vpop.f32.mrf.mxu0
    %v2107 = vadd.f32 %v2094, %v2106
    %v2108 = vpop.f32.mrf.mxu0
    %2109 = vdwg.mxu0
    %2110 = vmatpush.bf16.msra.mxu0 %v1534
    %2111 = vmatpush.bf16.msra.mxu0 %v1527
    %2112 = vmatpush.bf16.msra.mxu0 %v1520
    %2113 = vmatpush.bf16.msra.mxu0 %v1513
    %2114 = vmatpush.bf16.msra.mxu0 %v1506
    %2115 = vmatpush.bf16.msra.mxu0 %v1499
    %2116 = vmatpush.bf16.msra.mxu0 %v1492
    %2117 = vmatpush.bf16.msra.mxu0 %v1485
    %2118 = vmatmul.bf16.gmra.mxu0 %v334
    %v2119 = vpop.f32.mrf.mxu0
    %v2120 = vadd.f32 %v2107, %v2119
    %v2121 = vpop.f32.mrf.mxu0
    %2122 = vdwg.mxu0
    %2123 = vst [vmem:[#allocation2] sm:$0xff] %v1808
    %2124 = vst [vmem:[#allocation2 + $0x8] sm:$0xff] %v1860
    %2125 = vst [vmem:[#allocation2 + $0x10] sm:$0xff] %v1912
    %2126 = vst [vmem:[#allocation2 + $0x18] sm:$0xff] %v1964
    %2127 = vst [vmem:[#allocation2 + $0x20] sm:$0xff] %v2016
    %2128 = vst [vmem:[#allocation2 + $0x28] sm:$0xff] %v2068
    %2129 = vst [vmem:[#allocation2 + $0x30] sm:$0xff] %v2120
    // Predicated region
    $region30: #{g_forward.1} parent=1 // pred_check
      _
    $region31: #{g_forward.1} parent=1 // pred_check_branch
      %2131 = sbr.rel (0) target = $region33
    $region32: #{g_forward.1} parent=1 // pred_region
      %2133 = vsyncadd [#allocation3], 0
      %s2135 = sshll.u32 [#allocation2], 4
      %s2136 = int_to_ptr.vmem [resolvable:$true] %s2135
      %s2137 = sshll.u32 %s7, 4
      %s2138 = int_to_ptr.hbm [resolvable:$true] %s2137
      %2140 = dma.vmem_to_hbm [thread:$0]  %s2136, 896, %s2138, [#allocation3]
    $region33: #{g_forward.1} parent=1 // pred_fallthru
      _
    // Predicated region
    $region34: #{g_forward.1} parent=1 // pred_check
      _
    $region35: #{g_forward.1} parent=1 // pred_check_branch
      %2142 = sbr.rel (0) target = $region37
    $region36: #{g_forward.1} parent=1 // pred_region
      %2144 = dma.done [#allocation3], 896
    $region37: #{g_forward.1} parent=1 // pred_fallthru
      _
    %2145 = vsyncpa [#allocation3], 1

</llo_original>
